<compile_context>
chip_gen: v5e
topology: v5e:2x2
jax: 0.10.0
libtpu: 0.0.40
codegen_flags: <defaults>
</compile_context>

<pallas_src>
import math

import jax
import jax.numpy as jnp
from jax import lax
from jax.experimental import pallas as pl
from jax.experimental.pallas import tpu as pltpu  # imported for completeness (not required)
from jax.scipy.special import erf

# ------------------------- model configuration (small) -------------------------
B, S, D = 2, 8, 32          # batch, seq_len, dim
H = 4                       # n_heads
HD = D // H                 # width per head
DFF = 64                    # dim_ff
N_LAYERS = 2                # n_layers
MAX_LEN = 16
FRAME_ROWS, FRAME_COLS = 16, 16
PATCH = (4, 4)
EPS = 1e-12                 # TF-style LayerNorm epsilon (inside the sqrt)
ATT_SCALE = 1.0 / math.sqrt(HD)
BS = B * S
LOG2_S = S.bit_length() - 1
assert S == (1 << LOG2_S), "S must be a power of two for the shift-based block mask"


def _gelu(x):
    # Hugging-Face gelu: x * 0.5 * (1 + erf(x / sqrt(2)))
    return x * 0.5 * (1.0 + erf(x / math.sqrt(2.0)))


def _layernorm(x, gamma, beta):
    u = jnp.mean(x, axis=-1, keepdims=True)
    d = x - u
    s = jnp.mean(d * d, axis=-1, keepdims=True)
    return gamma * (d * lax.rsqrt(s + EPS)) + beta      # rsqrt -> EUP slot, not VALU divide


# --------------------------------- fused Pallas kernel -----------------------------------
def fused_transformer_kernel(x_ref, t_ref, r_ref, c_ref, wpos_ref, bpos_ref, mask_ref,
                             ge_ref, be_ref,
                             wqkv_ref, bqkv_ref, wp_ref, bp_ref, g1_ref, b1n_ref,
                             w1_ref, b1_ref, w2_ref, b2_ref, g2_ref, b2n_ref,
                             h_out_ref, emb_out_ref, scores_ref):
    # ---- Embeddings: 3->D positional linear (outer-product form), 'sum', TF LayerNorm ----
    wpos = wpos_ref[...]                                                  # (3, D)
    pos = ((t_ref[...] * (1.0 / (MAX_LEN - 1))) * wpos[0:1, :]
           + (r_ref[...] * (1.0 / (FRAME_ROWS - PATCH[0] - 1))) * wpos[1:2, :]
           + (c_ref[...] * (1.0 / (FRAME_COLS - PATCH[1] - 1))) * wpos[2:3, :]
           + bpos_ref[...])                                               # (S, D)
    h = _layernorm(x_ref[...] + jnp.concatenate([pos] * B, axis=0),
                   ge_ref[...], be_ref[...])                              # (B*S, D)
    emb_out_ref[...] = h
    # TODO(synk): dropout layers (p_drop_attn / p_drop_hidden) treated as identity (eval mode).

    # ---- Additive attention bias, hoisted (layer/head invariant) ----
    # key mask: -1e4 * (1 - mask) per key column; cross-batch blocks also get -1e4 so that a
    # single (B*S, B*S) softmax is exactly equivalent to per-batch softmax (exp underflows
    # to 0.0 in f32 for the off-diagonal blocks).
    row_b = jnp.right_shift(lax.broadcasted_iota(jnp.int32, (BS, BS), 0), LOG2_S)
    col_b = jnp.right_shift(lax.broadcasted_iota(jnp.int32, (BS, BS), 1), LOG2_S)
    att_bias = (jnp.where(row_b == col_b, 0.0, -10000.0)
                - 10000.0 * (1.0 - mask_ref[...]))                        # (BS, BS)

    for l in range(N_LAYERS):                   # static unroll over layers (L = 2)
        # Fused QKV projection: ONE (BS, D) @ (D, 3D) MXU push per layer.
        qkv = jnp.dot(h, wqkv_ref[l], preferred_element_type=jnp.float32) + bqkv_ref[l]

        p_heads, ctx_heads = [], []
        for hh in range(H):                     # static unroll over heads (lane slices only)
            q_h = qkv[:, hh * HD:(hh + 1) * HD]                           # (BS, HD)
            k_h = qkv[:, D + hh * HD:D + (hh + 1) * HD]
            v_h = qkv[:, 2 * D + hh * HD:2 * D + (hh + 1) * HD]

            # All batches in one matmul: (BS, HD) x (BS, HD)^T -> (BS, BS) scores.
            s_h = lax.dot_general(q_h, k_h, (((1,), (1,)), ((), ())),
                                  preferred_element_type=jnp.float32) * ATT_SCALE + att_bias
            s_h = s_h - jnp.max(s_h, axis=-1, keepdims=True)
            e_h = jnp.exp(s_h)
            p_h = e_h * pl.reciprocal(jnp.sum(e_h, axis=-1, keepdims=True), approx=True)
            p_heads.append(p_h)
            # Off-diagonal probabilities are exactly 0, so this is per-batch attention.
            ctx_heads.append(jnp.dot(p_h, v_h, preferred_element_type=jnp.float32))

        # Lane-dense score slab: one (BS, H*BS) = (16, 64) store per layer.
        scores_ref[l] = jnp.concatenate(p_heads, axis=1)

        # Head merge folded into a single K=D output projection (original (D, D) layout).
        ctx = jnp.concatenate(ctx_heads, axis=1)                          # (BS, D), head-major
        proj = jnp.dot(ctx, wp_ref[l], preferred_element_type=jnp.float32) + bp_ref[l]
        h1 = _layernorm(h + proj, g1_ref[l], b1n_ref[l])

        # Position-wise FFN on the full (BS, D) slab.
        ffh = _gelu(jnp.dot(h1, w1_ref[l], preferred_element_type=jnp.float32) + b1_ref[l])
        ff = jnp.dot(ffh, w2_ref[l], preferred_element_type=jnp.float32) + b2_ref[l]
        h = _layernorm(h1 + ff, g2_ref[l], b2n_ref[l])

    h_out_ref[...] = h


# ------------------------------ host-side packing / wrapper ------------------------------
def _pack_params(params):
    def stk(key):
        return jnp.stack([blk[key] for blk in params['blocks']], axis=0)

    wqkv = jnp.concatenate([stk('wq'), stk('wk'), stk('wv')], axis=-1)    # (L, D, 3D)
    bqkv = jnp.concatenate([stk('bq'), stk('bk'), stk('bv')], axis=-1)    # (L, 1, 3D)
    return (wqkv, bqkv, stk('wp'), stk('bp'), stk('g1'), stk('be1'),
            stk('w1'), stk('b1'), stk('w2'), stk('b2'), stk('g2'), stk('be2'))


@jax.jit
def transformer_forward(params, x, T, P_row, P_col, mask):
    packed = _pack_params(params)
    x2 = x.reshape(BS, D)
    t = T.reshape(S, 1)
    r = P_row.reshape(S, 1)
    c = P_col.reshape(S, 1)
    maskflat = mask.reshape(1, BS)

    out_shape = (
        jax.ShapeDtypeStruct((BS, D), jnp.float32),                  # final hidden states
        jax.ShapeDtypeStruct((BS, D), jnp.float32),                  # embedded patches
        jax.ShapeDtypeStruct((N_LAYERS, BS, H * BS), jnp.float32),   # lane-dense scores
    )

    # Single program, no grid: whole-array VMEM-resident operands (working set << 1 MiB).
    h2, emb2, scores_flat = pl.pallas_call(
        fused_transformer_kernel,
        out_shape=out_shape,
    )(x2, t, r, c, params['w_pos'], params['b_pos'].reshape(1, D), maskflat,
      params['g_emb'], params['be_emb'], *packed)

    h_out = h2.reshape(B, S, D)
    embedded_patches = emb2.reshape(B, S, D)

    # scores_flat[l, bq*S+sq, hh*BS + bk*S + sk]; take per-batch diagonal blocks (bq == bk).
    s6 = scores_flat.reshape(N_LAYERS, B, S, H, B, S)
    scores5 = jnp.stack([s6[:, b, :, :, b, :] for b in range(B)], axis=1)   # (L, B, S, H, S)
    scores5 = scores5.transpose(0, 1, 3, 2, 4)                              # (L, B, H, S, S)
    scores_per_layer = [scores5[l] for l in range(N_LAYERS)]
    # self.output_layer = 4 > n_layers - 1 here, so output_layer stays [] as in PyTorch.
    return h_out, scores_per_layer, embedded_patches


# ------------------------------ pure-JAX reference -------------------------------
def ref_forward(params, x, T, P_row, P_col, mask):
    pos_t = T / (MAX_LEN - 1)
    pos_x = P_row / (FRAME_ROWS - PATCH[0] - 1)
    pos_y = P_col / (FRAME_COLS - PATCH[1] - 1)
    feats = jnp.stack([pos_t, pos_x, pos_y], axis=1)
    pos = feats @ params['w_pos'] + params['b_pos']
    h = _layernorm(x + pos[None], params['g_emb'], params['be_emb'])
    emb = h
    scs = []
    for blk in params['blocks']:
        q = h @ blk['wq'] + blk['bq']
        k = h @ blk['wk'] + blk['bk']
        v = h @ blk['wv'] + blk['bv']
        qh = q.reshape(B, S, H, HD).transpose(0, 2, 1, 3)
        kh = k.reshape(B, S, H, HD).transpose(0, 2, 1, 3)
        vh = v.reshape(B, S, H, HD).transpose(0, 2, 1, 3)
        s = jnp.einsum('bhid,bhjd->bhij', qh, kh) / math.sqrt(HD)
        s = s - 10000.0 * (1.0 - mask[:, None, None, :])
        p = jax.nn.softmax(s, axis=-1)
        att = jnp.einsum('bhij,bhjd->bhid', p, vh).transpose(0, 2, 1, 3).reshape(B, S, D)
        h1 = _layernorm(h + (att @ blk['wp'] + blk['bp']), blk['g1'], blk['be1'])
        ff = _gelu(h1 @ blk['w1'] + blk['b1']) @ blk['w2'] + blk['b2']
        h = _layernorm(h1 + ff, blk['g2'], blk['be2'])
        scs.append(p)
    return h, scs, emb


# ----------------------------------- params --------------------------------------
def init_params(key):
    def nrm(key, shape, scale=0.02):
        return (scale * jax.random.normal(key, shape)).astype(jnp.float32)

    keys = iter(jax.random.split(key, 8 + 10 * N_LAYERS))
    params = {
        'w_pos': nrm(next(keys), (3, D)),
        'b_pos': nrm(next(keys), (D,)),
        'g_emb': jnp.ones((1, D), jnp.float32),
        'be_emb': jnp.zeros((1, D), jnp.float32),
        'blocks': [],
    }
    for _ in range(N_LAYERS):
        blk = {
            'wq': nrm(next(keys), (D, D)), 'bq': nrm(next(keys), (1, D)),
            'wk': nrm(next(keys), (D, D)), 'bk': nrm(next(keys), (1, D)),
            'wv': nrm(next(keys), (D, D)), 'bv': nrm(next(keys), (1, D)),
            'wp': nrm(next(keys), (D, D)), 'bp': nrm(next(keys), (1, D)),
            'g1': jnp.ones((1, D), jnp.float32), 'be1': jnp.zeros((1, D), jnp.float32),
            'w1': nrm(next(keys), (D, DFF)), 'b1': nrm(next(keys), (1, DFF)),
            'w2': nrm(next(keys), (DFF, D)), 'b2': nrm(next(keys), (1, D)),
            'g2': jnp.ones((1, D), jnp.float32), 'be2': jnp.zeros((1, D), jnp.float32),
        }
        params['blocks'].append(blk)
    return params


# ------------------------------------- main ---------------------------------------
if __name__ == "__main__":
    key = jax.random.PRNGKey(0)
    k_param, k_x = jax.random.split(key)
    params = init_params(k_param)

    x = jax.random.normal(k_x, (B, S, D), dtype=jnp.float32)
    T = jnp.arange(S, dtype=jnp.float32)
    P_row = (jnp.arange(S, dtype=jnp.float32) * 2.0) % (FRAME_ROWS - PATCH[0])
    P_col = (jnp.arange(S, dtype=jnp.float32) * 3.0) % (FRAME_COLS - PATCH[1])
    mask = jnp.ones((B, S), dtype=jnp.float32).at[1, -2:].set(0.0)

    h_out, scores_per_layer, embedded = transformer_forward(params, x, T, P_row, P_col, mask)
    jax.block_until_ready(h_out)
    for sc in scores_per_layer:
        jax.block_until_ready(sc)
    jax.block_until_ready(embedded)

    # Correctness vs a pure-JAX reference of the same math.  Tolerance slightly looser than
    # f32-exact because the kernel uses the EUP approximate reciprocal for the softmax
    # denominator (scores are not bit-matched to jax.nn.softmax).
    h_ref, scs_ref, emb_ref = ref_forward(params, x, T, P_row, P_col, mask)
    assert jnp.allclose(embedded, emb_ref, atol=2e-3, rtol=2e-3), "embedding mismatch"
    assert jnp.allclose(h_out, h_ref, atol=2e-3, rtol=2e-3), "output mismatch"
    for sp, sr in zip(scores_per_layer, scs_ref):
        assert jnp.allclose(sp, sr, atol=2e-3, rtol=2e-3), "scores mismatch"

    print("KERNEL_OK")
</pallas_src>

<mosaic_0001>
module attributes {stable_mosaic.version = 11 : i64} {
  func.func @fused_transformer_kernel(%arg0: memref<16x32xf32, #tpu.memory_space<vmem>>, %arg1: memref<8x1xf32, #tpu.memory_space<vmem>>, %arg2: memref<8x1xf32, #tpu.memory_space<vmem>>, %arg3: memref<8x1xf32, #tpu.memory_space<vmem>>, %arg4: memref<3x32xf32, #tpu.memory_space<vmem>>, %arg5: memref<1x32xf32, #tpu.memory_space<vmem>>, %arg6: memref<1x16xf32, #tpu.memory_space<vmem>>, %arg7: memref<1x32xf32, #tpu.memory_space<vmem>>, %arg8: memref<1x32xf32, #tpu.memory_space<vmem>>, %arg9: memref<2x32x96xf32, #tpu.memory_space<vmem>>, %arg10: memref<2x1x96xf32, #tpu.memory_space<vmem>>, %arg11: memref<2x32x32xf32, #tpu.memory_space<vmem>>, %arg12: memref<2x1x32xf32, #tpu.memory_space<vmem>>, %arg13: memref<2x1x32xf32, #tpu.memory_space<vmem>>, %arg14: memref<2x1x32xf32, #tpu.memory_space<vmem>>, %arg15: memref<2x32x64xf32, #tpu.memory_space<vmem>>, %arg16: memref<2x1x64xf32, #tpu.memory_space<vmem>>, %arg17: memref<2x64x32xf32, #tpu.memory_space<vmem>>, %arg18: memref<2x1x32xf32, #tpu.memory_space<vmem>>, %arg19: memref<2x1x32xf32, #tpu.memory_space<vmem>>, %arg20: memref<2x1x32xf32, #tpu.memory_space<vmem>>, %arg21: memref<16x32xf32, #tpu.memory_space<vmem>>, %arg22: memref<16x32xf32, #tpu.memory_space<vmem>>, %arg23: memref<2x16x64xf32, #tpu.memory_space<vmem>>) attributes {dimension_semantics = [], scalar_prefetch = 0 : i64, scratch_operands = 0 : i64, tpu.core_type = #tpu.core_type<tc>} {
    %c0 = arith.constant 0 : index
    %c0_0 = arith.constant 0 : index
    %0 = vector.load %arg4[%c0, %c0_0] : memref<3x32xf32, #tpu.memory_space<vmem>>, vector<3x32xf32>
    %c0_1 = arith.constant 0 : index
    %c0_2 = arith.constant 0 : index
    %1 = vector.load %arg1[%c0_1, %c0_2] : memref<8x1xf32, #tpu.memory_space<vmem>>, vector<8x1xf32>
    %cst = arith.constant 0.0666666701 : f32
    %2 = vector.broadcast %cst : f32 to vector<8x1xf32>
    %3 = arith.mulf %1, %2 : vector<8x1xf32>
    %4 = vector.extract_strided_slice %0 {offsets = [0, 0], sizes = [1, 32], strides = [1, 1]} : vector<3x32xf32> to vector<1x32xf32>
    %5 = vector.broadcast %3 : vector<8x1xf32> to vector<8x32xf32>
    %6 = vector.broadcast %4 : vector<1x32xf32> to vector<8x32xf32>
    %7 = arith.mulf %5, %6 : vector<8x32xf32>
    %c0_3 = arith.constant 0 : index
    %c0_4 = arith.constant 0 : index
    %8 = vector.load %arg2[%c0_3, %c0_4] : memref<8x1xf32, #tpu.memory_space<vmem>>, vector<8x1xf32>
    %cst_5 = arith.constant 0.0909090936 : f32
    %9 = vector.broadcast %cst_5 : f32 to vector<8x1xf32>
    %10 = arith.mulf %8, %9 : vector<8x1xf32>
    %11 = vector.extract_strided_slice %0 {offsets = [1, 0], sizes = [1, 32], strides = [1, 1]} : vector<3x32xf32> to vector<1x32xf32>
    %12 = vector.broadcast %10 : vector<8x1xf32> to vector<8x32xf32>
    %13 = vector.broadcast %11 : vector<1x32xf32> to vector<8x32xf32>
    %14 = arith.mulf %12, %13 : vector<8x32xf32>
    %15 = arith.addf %7, %14 : vector<8x32xf32>
    %c0_6 = arith.constant 0 : index
    %c0_7 = arith.constant 0 : index
    %16 = vector.load %arg3[%c0_6, %c0_7] : memref<8x1xf32, #tpu.memory_space<vmem>>, vector<8x1xf32>
    %cst_8 = arith.constant 0.0909090936 : f32
    %17 = vector.broadcast %cst_8 : f32 to vector<8x1xf32>
    %18 = arith.mulf %16, %17 : vector<8x1xf32>
    %19 = vector.extract_strided_slice %0 {offsets = [2, 0], sizes = [1, 32], strides = [1, 1]} : vector<3x32xf32> to vector<1x32xf32>
    %20 = vector.broadcast %18 : vector<8x1xf32> to vector<8x32xf32>
    %21 = vector.broadcast %19 : vector<1x32xf32> to vector<8x32xf32>
    %22 = arith.mulf %20, %21 : vector<8x32xf32>
    %23 = arith.addf %15, %22 : vector<8x32xf32>
    %c0_9 = arith.constant 0 : index
    %c0_10 = arith.constant 0 : index
    %24 = vector.load %arg5[%c0_9, %c0_10] : memref<1x32xf32, #tpu.memory_space<vmem>>, vector<1x32xf32>
    %25 = vector.broadcast %24 : vector<1x32xf32> to vector<8x32xf32>
    %26 = arith.addf %23, %25 : vector<8x32xf32>
    %c0_11 = arith.constant 0 : index
    %c0_12 = arith.constant 0 : index
    %27 = vector.load %arg0[%c0_11, %c0_12] : memref<16x32xf32, #tpu.memory_space<vmem>>, vector<16x32xf32>
    %28 = tpu.concatenate %26, %26 in 0 : vector<8x32xf32>, vector<8x32xf32> -> vector<16x32xf32>
    %29 = arith.addf %27, %28 : vector<16x32xf32>
    %c0_13 = arith.constant 0 : index
    %c0_14 = arith.constant 0 : index
    %30 = vector.load %arg7[%c0_13, %c0_14] : memref<1x32xf32, #tpu.memory_space<vmem>>, vector<1x32xf32>
    %c0_15 = arith.constant 0 : index
    %c0_16 = arith.constant 0 : index
    %31 = vector.load %arg8[%c0_15, %c0_16] : memref<1x32xf32, #tpu.memory_space<vmem>>, vector<1x32xf32>
    %cst_17 = arith.constant dense<0.000000e+00> : vector<16xf32>
    %32 = vector.multi_reduction <add>, %29, %cst_17 [1] : vector<16x32xf32> to vector<16xf32>
    %33 = vector.shape_cast %32 : vector<16xf32> to vector<16x1xf32>
    %cst_18 = arith.constant 3.200000e+01 : f32
    %34 = vector.broadcast %cst_18 : f32 to vector<16x1xf32>
    %35 = arith.divf %33, %34 : vector<16x1xf32>
    %36 = vector.broadcast %35 : vector<16x1xf32> to vector<16x32xf32>
    %37 = arith.subf %29, %36 : vector<16x32xf32>
    %38 = arith.mulf %37, %37 : vector<16x32xf32>
    %cst_19 = arith.constant dense<0.000000e+00> : vector<16xf32>
    %39 = vector.multi_reduction <add>, %38, %cst_19 [1] : vector<16x32xf32> to vector<16xf32>
    %40 = vector.shape_cast %39 : vector<16xf32> to vector<16x1xf32>
    %cst_20 = arith.constant 3.200000e+01 : f32
    %41 = vector.broadcast %cst_20 : f32 to vector<16x1xf32>
    %42 = arith.divf %40, %41 : vector<16x1xf32>
    %cst_21 = arith.constant 9.99999996E-13 : f32
    %43 = vector.broadcast %cst_21 : f32 to vector<16x1xf32>
    %44 = arith.addf %42, %43 : vector<16x1xf32>
    %45 = math.rsqrt %44 : vector<16x1xf32>
    %46 = vector.broadcast %45 : vector<16x1xf32> to vector<16x32xf32>
    %47 = arith.mulf %37, %46 : vector<16x32xf32>
    %48 = vector.broadcast %30 : vector<1x32xf32> to vector<16x32xf32>
    %49 = arith.mulf %48, %47 : vector<16x32xf32>
    %50 = vector.broadcast %31 : vector<1x32xf32> to vector<16x32xf32>
    %51 = arith.addf %49, %50 : vector<16x32xf32>
    %c0_22 = arith.constant 0 : index
    %c0_23 = arith.constant 0 : index
    %52 = vector.load %arg22[%c0_22, %c0_23] : memref<16x32xf32, #tpu.memory_space<vmem>>, vector<16x32xf32>
    tpu.vector_store %arg22[%c0_22, %c0_23], %51 {strides = array<i32>} : memref<16x32xf32, #tpu.memory_space<vmem>>, vector<16x32xf32>,
    %53 = tpu.iota {dimensions = array<i32: 0>} : vector<16x16xi32>
    %c3_i32 = arith.constant 3 : i32
    %54 = vector.broadcast %c3_i32 : i32 to vector<16x16xi32>
    %55 = arith.shrsi %53, %54 : vector<16x16xi32>
    %56 = tpu.iota {dimensions = array<i32: 1>} : vector<16x16xi32>
    %c3_i32_24 = arith.constant 3 : i32
    %57 = vector.broadcast %c3_i32_24 : i32 to vector<16x16xi32>
    %58 = arith.shrsi %56, %57 : vector<16x16xi32>
    %59 = arith.cmpi eq, %55, %58 : vector<16x16xi32>
    %cst_25 = arith.constant 0.000000e+00 : f32
    %cst_26 = arith.constant -1.000000e+04 : f32
    %60 = vector.broadcast %cst_25 : f32 to vector<16x16xf32>
    %61 = vector.broadcast %cst_26 : f32 to vector<16x16xf32>
    %62 = arith.select %59, %60, %61 : vector<16x16xi1>, vector<16x16xf32>
    %c0_27 = arith.constant 0 : index
    %c0_28 = arith.constant 0 : index
    %63 = vector.load %arg6[%c0_27, %c0_28] : memref<1x16xf32, #tpu.memory_space<vmem>>, vector<1x16xf32>
    %cst_29 = arith.constant 1.000000e+00 : f32
    %64 = vector.broadcast %cst_29 : f32 to vector<1x16xf32>
    %65 = arith.subf %64, %63 : vector<1x16xf32>
    %cst_30 = arith.constant 1.000000e+04 : f32
    %66 = vector.broadcast %cst_30 : f32 to vector<1x16xf32>
    %67 = arith.mulf %66, %65 : vector<1x16xf32>
    %68 = vector.broadcast %67 : vector<1x16xf32> to vector<16x16xf32>
    %69 = arith.subf %62, %68 : vector<16x16xf32>
    %c0_31 = arith.constant 0 : index
    %c0_32 = arith.constant 0 : index
    %c0_33 = arith.constant 0 : index
    %70 = vector.load %arg9[%c0_31, %c0_32, %c0_33] : memref<2x32x96xf32, #tpu.memory_space<vmem>>, vector<1x32x96xf32>
    %71 = vector.shape_cast %70 : vector<1x32x96xf32> to vector<32x96xf32>
    %cst_34 = arith.constant dense<0.000000e+00> : vector<16x96xf32>
    %72 = tpu.matmul %51, %71, %cst_34 {dimension_numbers = #tpu.dot_dimension_numbers<[1], [0], [0], [1], [0, 0, 1, 1], [], []>} : vector<16x32xf32>, vector<32x96xf32>, vector<16x96xf32> -> vector<16x96xf32>
    %c0_35 = arith.constant 0 : index
    %c0_36 = arith.constant 0 : index
    %c0_37 = arith.constant 0 : index
    %73 = vector.load %arg10[%c0_35, %c0_36, %c0_37] : memref<2x1x96xf32, #tpu.memory_space<vmem>>, vector<1x1x96xf32>
    %74 = vector.shape_cast %73 : vector<1x1x96xf32> to vector<1x96xf32>
    %75 = vector.broadcast %74 : vector<1x96xf32> to vector<16x96xf32>
    %76 = arith.addf %72, %75 : vector<16x96xf32>
    %77 = vector.extract_strided_slice %76 {offsets = [0, 0], sizes = [16, 8], strides = [1, 1]} : vector<16x96xf32> to vector<16x8xf32>
    %78 = vector.extract_strided_slice %76 {offsets = [0, 32], sizes = [16, 8], strides = [1, 1]} : vector<16x96xf32> to vector<16x8xf32>
    %79 = vector.extract_strided_slice %76 {offsets = [0, 64], sizes = [16, 8], strides = [1, 1]} : vector<16x96xf32> to vector<16x8xf32>
    %cst_38 = arith.constant dense<0.000000e+00> : vector<16x16xf32>
    %80 = tpu.matmul %77, %78, %cst_38 {dimension_numbers = #tpu.dot_dimension_numbers<[1], [1], [0], [0], [0, 0, 1, 0], [], []>} : vector<16x8xf32>, vector<16x8xf32>, vector<16x16xf32> -> vector<16x16xf32>
    %cst_39 = arith.constant 0.353553385 : f32
    %81 = vector.broadcast %cst_39 : f32 to vector<16x16xf32>
    %82 = arith.mulf %80, %81 : vector<16x16xf32>
    %83 = arith.addf %82, %69 : vector<16x16xf32>
    %cst_40 = arith.constant dense<0xFF800000> : vector<16xf32>
    %84 = vector.multi_reduction <maximumf>, %83, %cst_40 [1] : vector<16x16xf32> to vector<16xf32>
    %85 = vector.shape_cast %84 : vector<16xf32> to vector<16x1xf32>
    %86 = vector.broadcast %85 : vector<16x1xf32> to vector<16x16xf32>
    %87 = arith.subf %83, %86 : vector<16x16xf32>
    %88 = math.exp %87 : vector<16x16xf32>
    %cst_41 = arith.constant dense<0.000000e+00> : vector<16xf32>
    %89 = vector.multi_reduction <add>, %88, %cst_41 [1] : vector<16x16xf32> to vector<16xf32>
    %90 = vector.shape_cast %89 : vector<16xf32> to vector<16x1xf32>
    %91 = tpu.reciprocal %90 {approx = true} : vector<16x1xf32> -> vector<16x1xf32>
    %92 = vector.broadcast %91 : vector<16x1xf32> to vector<16x16xf32>
    %93 = arith.mulf %88, %92 : vector<16x16xf32>
    %cst_42 = arith.constant dense<0.000000e+00> : vector<16x8xf32>
    %94 = tpu.matmul %93, %79, %cst_42 {dimension_numbers = #tpu.dot_dimension_numbers<[1], [0], [0], [1], [0, 0, 1, 1], [], []>} : vector<16x16xf32>, vector<16x8xf32>, vector<16x8xf32> -> vector<16x8xf32>
    %95 = vector.extract_strided_slice %76 {offsets = [0, 8], sizes = [16, 8], strides = [1, 1]} : vector<16x96xf32> to vector<16x8xf32>
    %96 = vector.extract_strided_slice %76 {offsets = [0, 40], sizes = [16, 8], strides = [1, 1]} : vector<16x96xf32> to vector<16x8xf32>
    %97 = vector.extract_strided_slice %76 {offsets = [0, 72], sizes = [16, 8], strides = [1, 1]} : vector<16x96xf32> to vector<16x8xf32>
    %cst_43 = arith.constant dense<0.000000e+00> : vector<16x16xf32>
    %98 = tpu.matmul %95, %96, %cst_43 {dimension_numbers = #tpu.dot_dimension_numbers<[1], [1], [0], [0], [0, 0, 1, 0], [], []>} : vector<16x8xf32>, vector<16x8xf32>, vector<16x16xf32> -> vector<16x16xf32>
    %cst_44 = arith.constant 0.353553385 : f32
    %99 = vector.broadcast %cst_44 : f32 to vector<16x16xf32>
    %100 = arith.mulf %98, %99 : vector<16x16xf32>
    %101 = arith.addf %100, %69 : vector<16x16xf32>
    %cst_45 = arith.constant dense<0xFF800000> : vector<16xf32>
    %102 = vector.multi_reduction <maximumf>, %101, %cst_45 [1] : vector<16x16xf32> to vector<16xf32>
    %103 = vector.shape_cast %102 : vector<16xf32> to vector<16x1xf32>
    %104 = vector.broadcast %103 : vector<16x1xf32> to vector<16x16xf32>
    %105 = arith.subf %101, %104 : vector<16x16xf32>
    %106 = math.exp %105 : vector<16x16xf32>
    %cst_46 = arith.constant dense<0.000000e+00> : vector<16xf32>
    %107 = vector.multi_reduction <add>, %106, %cst_46 [1] : vector<16x16xf32> to vector<16xf32>
    %108 = vector.shape_cast %107 : vector<16xf32> to vector<16x1xf32>
    %109 = tpu.reciprocal %108 {approx = true} : vector<16x1xf32> -> vector<16x1xf32>
    %110 = vector.broadcast %109 : vector<16x1xf32> to vector<16x16xf32>
    %111 = arith.mulf %106, %110 : vector<16x16xf32>
    %cst_47 = arith.constant dense<0.000000e+00> : vector<16x8xf32>
    %112 = tpu.matmul %111, %97, %cst_47 {dimension_numbers = #tpu.dot_dimension_numbers<[1], [0], [0], [1], [0, 0, 1, 1], [], []>} : vector<16x16xf32>, vector<16x8xf32>, vector<16x8xf32> -> vector<16x8xf32>
    %113 = vector.extract_strided_slice %76 {offsets = [0, 16], sizes = [16, 8], strides = [1, 1]} : vector<16x96xf32> to vector<16x8xf32>
    %114 = vector.extract_strided_slice %76 {offsets = [0, 48], sizes = [16, 8], strides = [1, 1]} : vector<16x96xf32> to vector<16x8xf32>
    %115 = vector.extract_strided_slice %76 {offsets = [0, 80], sizes = [16, 8], strides = [1, 1]} : vector<16x96xf32> to vector<16x8xf32>
    %cst_48 = arith.constant dense<0.000000e+00> : vector<16x16xf32>
    %116 = tpu.matmul %113, %114, %cst_48 {dimension_numbers = #tpu.dot_dimension_numbers<[1], [1], [0], [0], [0, 0, 1, 0], [], []>} : vector<16x8xf32>, vector<16x8xf32>, vector<16x16xf32> -> vector<16x16xf32>
    %cst_49 = arith.constant 0.353553385 : f32
    %117 = vector.broadcast %cst_49 : f32 to vector<16x16xf32>
    %118 = arith.mulf %116, %117 : vector<16x16xf32>
    %119 = arith.addf %118, %69 : vector<16x16xf32>
    %cst_50 = arith.constant dense<0xFF800000> : vector<16xf32>
    %120 = vector.multi_reduction <maximumf>, %119, %cst_50 [1] : vector<16x16xf32> to vector<16xf32>
    %121 = vector.shape_cast %120 : vector<16xf32> to vector<16x1xf32>
    %122 = vector.broadcast %121 : vector<16x1xf32> to vector<16x16xf32>
    %123 = arith.subf %119, %122 : vector<16x16xf32>
    %124 = math.exp %123 : vector<16x16xf32>
    %cst_51 = arith.constant dense<0.000000e+00> : vector<16xf32>
    %125 = vector.multi_reduction <add>, %124, %cst_51 [1] : vector<16x16xf32> to vector<16xf32>
    %126 = vector.shape_cast %125 : vector<16xf32> to vector<16x1xf32>
    %127 = tpu.reciprocal %126 {approx = true} : vector<16x1xf32> -> vector<16x1xf32>
    %128 = vector.broadcast %127 : vector<16x1xf32> to vector<16x16xf32>
    %129 = arith.mulf %124, %128 : vector<16x16xf32>
    %cst_52 = arith.constant dense<0.000000e+00> : vector<16x8xf32>
    %130 = tpu.matmul %129, %115, %cst_52 {dimension_numbers = #tpu.dot_dimension_numbers<[1], [0], [0], [1], [0, 0, 1, 1], [], []>} : vector<16x16xf32>, vector<16x8xf32>, vector<16x8xf32> -> vector<16x8xf32>
    %131 = vector.extract_strided_slice %76 {offsets = [0, 24], sizes = [16, 8], strides = [1, 1]} : vector<16x96xf32> to vector<16x8xf32>
    %132 = vector.extract_strided_slice %76 {offsets = [0, 56], sizes = [16, 8], strides = [1, 1]} : vector<16x96xf32> to vector<16x8xf32>
    %133 = vector.extract_strided_slice %76 {offsets = [0, 88], sizes = [16, 8], strides = [1, 1]} : vector<16x96xf32> to vector<16x8xf32>
    %cst_53 = arith.constant dense<0.000000e+00> : vector<16x16xf32>
    %134 = tpu.matmul %131, %132, %cst_53 {dimension_numbers = #tpu.dot_dimension_numbers<[1], [1], [0], [0], [0, 0, 1, 0], [], []>} : vector<16x8xf32>, vector<16x8xf32>, vector<16x16xf32> -> vector<16x16xf32>
    %cst_54 = arith.constant 0.353553385 : f32
    %135 = vector.broadcast %cst_54 : f32 to vector<16x16xf32>
    %136 = arith.mulf %134, %135 : vector<16x16xf32>
    %137 = arith.addf %136, %69 : vector<16x16xf32>
    %cst_55 = arith.constant dense<0xFF800000> : vector<16xf32>
    %138 = vector.multi_reduction <maximumf>, %137, %cst_55 [1] : vector<16x16xf32> to vector<16xf32>
    %139 = vector.shape_cast %138 : vector<16xf32> to vector<16x1xf32>
    %140 = vector.broadcast %139 : vector<16x1xf32> to vector<16x16xf32>
    %141 = arith.subf %137, %140 : vector<16x16xf32>
    %142 = math.exp %141 : vector<16x16xf32>
    %cst_56 = arith.constant dense<0.000000e+00> : vector<16xf32>
    %143 = vector.multi_reduction <add>, %142, %cst_56 [1] : vector<16x16xf32> to vector<16xf32>
    %144 = vector.shape_cast %143 : vector<16xf32> to vector<16x1xf32>
    %145 = tpu.reciprocal %144 {approx = true} : vector<16x1xf32> -> vector<16x1xf32>
    %146 = vector.broadcast %145 : vector<16x1xf32> to vector<16x16xf32>
    %147 = arith.mulf %142, %146 : vector<16x16xf32>
    %cst_57 = arith.constant dense<0.000000e+00> : vector<16x8xf32>
    %148 = tpu.matmul %147, %133, %cst_57 {dimension_numbers = #tpu.dot_dimension_numbers<[1], [0], [0], [1], [0, 0, 1, 1], [], []>} : vector<16x16xf32>, vector<16x8xf32>, vector<16x8xf32> -> vector<16x8xf32>
    %149 = tpu.concatenate %93, %111, %129, %147 in 1 : vector<16x16xf32>, vector<16x16xf32>, vector<16x16xf32>, vector<16x16xf32> -> vector<16x64xf32>
    %c0_58 = arith.constant 0 : index
    %c0_59 = arith.constant 0 : index
    %c0_60 = arith.constant 0 : index
    %150 = vector.load %arg23[%c0_58, %c0_59, %c0_60] : memref<2x16x64xf32, #tpu.memory_space<vmem>>, vector<1x16x64xf32>
    %151 = vector.shape_cast %150 : vector<1x16x64xf32> to vector<16x64xf32>
    %152 = vector.shape_cast %149 : vector<16x64xf32> to vector<1x16x64xf32>
    tpu.vector_store %arg23[%c0_58, %c0_59, %c0_60], %152 {strides = array<i32>} : memref<2x16x64xf32, #tpu.memory_space<vmem>>, vector<1x16x64xf32>,
    %153 = tpu.concatenate %94, %112, %130, %148 in 1 : vector<16x8xf32>, vector<16x8xf32>, vector<16x8xf32>, vector<16x8xf32> -> vector<16x32xf32>
    %c0_61 = arith.constant 0 : index
    %c0_62 = arith.constant 0 : index
    %c0_63 = arith.constant 0 : index
    %154 = vector.load %arg11[%c0_61, %c0_62, %c0_63] : memref<2x32x32xf32, #tpu.memory_space<vmem>>, vector<1x32x32xf32>
    %155 = vector.shape_cast %154 : vector<1x32x32xf32> to vector<32x32xf32>
    %cst_64 = arith.constant dense<0.000000e+00> : vector<16x32xf32>
    %156 = tpu.matmul %153, %155, %cst_64 {dimension_numbers = #tpu.dot_dimension_numbers<[1], [0], [0], [1], [0, 0, 1, 1], [], []>} : vector<16x32xf32>, vector<32x32xf32>, vector<16x32xf32> -> vector<16x32xf32>
    %c0_65 = arith.constant 0 : index
    %c0_66 = arith.constant 0 : index
    %c0_67 = arith.constant 0 : index
    %157 = vector.load %arg12[%c0_65, %c0_66, %c0_67] : memref<2x1x32xf32, #tpu.memory_space<vmem>>, vector<1x1x32xf32>
    %158 = vector.shape_cast %157 : vector<1x1x32xf32> to vector<1x32xf32>
    %159 = vector.broadcast %158 : vector<1x32xf32> to vector<16x32xf32>
    %160 = arith.addf %156, %159 : vector<16x32xf32>
    %161 = arith.addf %51, %160 : vector<16x32xf32>
    %c0_68 = arith.constant 0 : index
    %c0_69 = arith.constant 0 : index
    %c0_70 = arith.constant 0 : index
    %162 = vector.load %arg13[%c0_68, %c0_69, %c0_70] : memref<2x1x32xf32, #tpu.memory_space<vmem>>, vector<1x1x32xf32>
    %163 = vector.shape_cast %162 : vector<1x1x32xf32> to vector<1x32xf32>
    %c0_71 = arith.constant 0 : index
    %c0_72 = arith.constant 0 : index
    %c0_73 = arith.constant 0 : index
    %164 = vector.load %arg14[%c0_71, %c0_72, %c0_73] : memref<2x1x32xf32, #tpu.memory_space<vmem>>, vector<1x1x32xf32>
    %165 = vector.shape_cast %164 : vector<1x1x32xf32> to vector<1x32xf32>
    %cst_74 = arith.constant dense<0.000000e+00> : vector<16xf32>
    %166 = vector.multi_reduction <add>, %161, %cst_74 [1] : vector<16x32xf32> to vector<16xf32>
    %167 = vector.shape_cast %166 : vector<16xf32> to vector<16x1xf32>
    %cst_75 = arith.constant 3.200000e+01 : f32
    %168 = vector.broadcast %cst_75 : f32 to vector<16x1xf32>
    %169 = arith.divf %167, %168 : vector<16x1xf32>
    %170 = vector.broadcast %169 : vector<16x1xf32> to vector<16x32xf32>
    %171 = arith.subf %161, %170 : vector<16x32xf32>
    %172 = arith.mulf %171, %171 : vector<16x32xf32>
    %cst_76 = arith.constant dense<0.000000e+00> : vector<16xf32>
    %173 = vector.multi_reduction <add>, %172, %cst_76 [1] : vector<16x32xf32> to vector<16xf32>
    %174 = vector.shape_cast %173 : vector<16xf32> to vector<16x1xf32>
    %cst_77 = arith.constant 3.200000e+01 : f32
    %175 = vector.broadcast %cst_77 : f32 to vector<16x1xf32>
    %176 = arith.divf %174, %175 : vector<16x1xf32>
    %cst_78 = arith.constant 9.99999996E-13 : f32
    %177 = vector.broadcast %cst_78 : f32 to vector<16x1xf32>
    %178 = arith.addf %176, %177 : vector<16x1xf32>
    %179 = math.rsqrt %178 : vector<16x1xf32>
    %180 = vector.broadcast %179 : vector<16x1xf32> to vector<16x32xf32>
    %181 = arith.mulf %171, %180 : vector<16x32xf32>
    %182 = vector.broadcast %163 : vector<1x32xf32> to vector<16x32xf32>
    %183 = arith.mulf %182, %181 : vector<16x32xf32>
    %184 = vector.broadcast %165 : vector<1x32xf32> to vector<16x32xf32>
    %185 = arith.addf %183, %184 : vector<16x32xf32>
    %c0_79 = arith.constant 0 : index
    %c0_80 = arith.constant 0 : index
    %c0_81 = arith.constant 0 : index
    %186 = vector.load %arg15[%c0_79, %c0_80, %c0_81] : memref<2x32x64xf32, #tpu.memory_space<vmem>>, vector<1x32x64xf32>
    %187 = vector.shape_cast %186 : vector<1x32x64xf32> to vector<32x64xf32>
    %cst_82 = arith.constant dense<0.000000e+00> : vector<16x64xf32>
    %188 = tpu.matmul %185, %187, %cst_82 {dimension_numbers = #tpu.dot_dimension_numbers<[1], [0], [0], [1], [0, 0, 1, 1], [], []>} : vector<16x32xf32>, vector<32x64xf32>, vector<16x64xf32> -> vector<16x64xf32>
    %c0_83 = arith.constant 0 : index
    %c0_84 = arith.constant 0 : index
    %c0_85 = arith.constant 0 : index
    %189 = vector.load %arg16[%c0_83, %c0_84, %c0_85] : memref<2x1x64xf32, #tpu.memory_space<vmem>>, vector<1x1x64xf32>
    %190 = vector.shape_cast %189 : vector<1x1x64xf32> to vector<1x64xf32>
    %191 = vector.broadcast %190 : vector<1x64xf32> to vector<16x64xf32>
    %192 = arith.addf %188, %191 : vector<16x64xf32>
    %cst_86 = arith.constant 5.000000e-01 : f32
    %193 = vector.broadcast %cst_86 : f32 to vector<16x64xf32>
    %194 = arith.mulf %192, %193 : vector<16x64xf32>
    %cst_87 = arith.constant 1.41421354 : f32
    %195 = vector.broadcast %cst_87 : f32 to vector<16x64xf32>
    %196 = arith.divf %192, %195 : vector<16x64xf32>
    %197 = math.erf %196 : vector<16x64xf32>
    %cst_88 = arith.constant 1.000000e+00 : f32
    %198 = vector.broadcast %cst_88 : f32 to vector<16x64xf32>
    %199 = arith.addf %198, %197 : vector<16x64xf32>
    %200 = arith.mulf %194, %199 : vector<16x64xf32>
    %c0_89 = arith.constant 0 : index
    %c0_90 = arith.constant 0 : index
    %c0_91 = arith.constant 0 : index
    %201 = vector.load %arg17[%c0_89, %c0_90, %c0_91] : memref<2x64x32xf32, #tpu.memory_space<vmem>>, vector<1x64x32xf32>
    %202 = vector.shape_cast %201 : vector<1x64x32xf32> to vector<64x32xf32>
    %cst_92 = arith.constant dense<0.000000e+00> : vector<16x32xf32>
    %203 = tpu.matmul %200, %202, %cst_92 {dimension_numbers = #tpu.dot_dimension_numbers<[1], [0], [0], [1], [0, 0, 1, 1], [], []>} : vector<16x64xf32>, vector<64x32xf32>, vector<16x32xf32> -> vector<16x32xf32>
    %c0_93 = arith.constant 0 : index
    %c0_94 = arith.constant 0 : index
    %c0_95 = arith.constant 0 : index
    %204 = vector.load %arg18[%c0_93, %c0_94, %c0_95] : memref<2x1x32xf32, #tpu.memory_space<vmem>>, vector<1x1x32xf32>
    %205 = vector.shape_cast %204 : vector<1x1x32xf32> to vector<1x32xf32>
    %206 = vector.broadcast %205 : vector<1x32xf32> to vector<16x32xf32>
    %207 = arith.addf %203, %206 : vector<16x32xf32>
    %208 = arith.addf %185, %207 : vector<16x32xf32>
    %c0_96 = arith.constant 0 : index
    %c0_97 = arith.constant 0 : index
    %c0_98 = arith.constant 0 : index
    %209 = vector.load %arg19[%c0_96, %c0_97, %c0_98] : memref<2x1x32xf32, #tpu.memory_space<vmem>>, vector<1x1x32xf32>
    %210 = vector.shape_cast %209 : vector<1x1x32xf32> to vector<1x32xf32>
    %c0_99 = arith.constant 0 : index
    %c0_100 = arith.constant 0 : index
    %c0_101 = arith.constant 0 : index
    %211 = vector.load %arg20[%c0_99, %c0_100, %c0_101] : memref<2x1x32xf32, #tpu.memory_space<vmem>>, vector<1x1x32xf32>
    %212 = vector.shape_cast %211 : vector<1x1x32xf32> to vector<1x32xf32>
    %cst_102 = arith.constant dense<0.000000e+00> : vector<16xf32>
    %213 = vector.multi_reduction <add>, %208, %cst_102 [1] : vector<16x32xf32> to vector<16xf32>
    %214 = vector.shape_cast %213 : vector<16xf32> to vector<16x1xf32>
    %cst_103 = arith.constant 3.200000e+01 : f32
    %215 = vector.broadcast %cst_103 : f32 to vector<16x1xf32>
    %216 = arith.divf %214, %215 : vector<16x1xf32>
    %217 = vector.broadcast %216 : vector<16x1xf32> to vector<16x32xf32>
    %218 = arith.subf %208, %217 : vector<16x32xf32>
    %219 = arith.mulf %218, %218 : vector<16x32xf32>
    %cst_104 = arith.constant dense<0.000000e+00> : vector<16xf32>
    %220 = vector.multi_reduction <add>, %219, %cst_104 [1] : vector<16x32xf32> to vector<16xf32>
    %221 = vector.shape_cast %220 : vector<16xf32> to vector<16x1xf32>
    %cst_105 = arith.constant 3.200000e+01 : f32
    %222 = vector.broadcast %cst_105 : f32 to vector<16x1xf32>
    %223 = arith.divf %221, %222 : vector<16x1xf32>
    %cst_106 = arith.constant 9.99999996E-13 : f32
    %224 = vector.broadcast %cst_106 : f32 to vector<16x1xf32>
    %225 = arith.addf %223, %224 : vector<16x1xf32>
    %226 = math.rsqrt %225 : vector<16x1xf32>
    %227 = vector.broadcast %226 : vector<16x1xf32> to vector<16x32xf32>
    %228 = arith.mulf %218, %227 : vector<16x32xf32>
    %229 = vector.broadcast %210 : vector<1x32xf32> to vector<16x32xf32>
    %230 = arith.mulf %229, %228 : vector<16x32xf32>
    %231 = vector.broadcast %212 : vector<1x32xf32> to vector<16x32xf32>
    %232 = arith.addf %230, %231 : vector<16x32xf32>
    %c1 = arith.constant 1 : index
    %c0_107 = arith.constant 0 : index
    %c0_108 = arith.constant 0 : index
    %233 = vector.load %arg9[%c1, %c0_107, %c0_108] : memref<2x32x96xf32, #tpu.memory_space<vmem>>, vector<1x32x96xf32>
    %234 = vector.shape_cast %233 : vector<1x32x96xf32> to vector<32x96xf32>
    %cst_109 = arith.constant dense<0.000000e+00> : vector<16x96xf32>
    %235 = tpu.matmul %232, %234, %cst_109 {dimension_numbers = #tpu.dot_dimension_numbers<[1], [0], [0], [1], [0, 0, 1, 1], [], []>} : vector<16x32xf32>, vector<32x96xf32>, vector<16x96xf32> -> vector<16x96xf32>
    %c1_110 = arith.constant 1 : index
    %c0_111 = arith.constant 0 : index
    %c0_112 = arith.constant 0 : index
    %236 = vector.load %arg10[%c1_110, %c0_111, %c0_112] : memref<2x1x96xf32, #tpu.memory_space<vmem>>, vector<1x1x96xf32>
    %237 = vector.shape_cast %236 : vector<1x1x96xf32> to vector<1x96xf32>
    %238 = vector.broadcast %237 : vector<1x96xf32> to vector<16x96xf32>
    %239 = arith.addf %235, %238 : vector<16x96xf32>
    %240 = vector.extract_strided_slice %239 {offsets = [0, 0], sizes = [16, 8], strides = [1, 1]} : vector<16x96xf32> to vector<16x8xf32>
    %241 = vector.extract_strided_slice %239 {offsets = [0, 32], sizes = [16, 8], strides = [1, 1]} : vector<16x96xf32> to vector<16x8xf32>
    %242 = vector.extract_strided_slice %239 {offsets = [0, 64], sizes = [16, 8], strides = [1, 1]} : vector<16x96xf32> to vector<16x8xf32>
    %cst_113 = arith.constant dense<0.000000e+00> : vector<16x16xf32>
    %243 = tpu.matmul %240, %241, %cst_113 {dimension_numbers = #tpu.dot_dimension_numbers<[1], [1], [0], [0], [0, 0, 1, 0], [], []>} : vector<16x8xf32>, vector<16x8xf32>, vector<16x16xf32> -> vector<16x16xf32>
    %cst_114 = arith.constant 0.353553385 : f32
    %244 = vector.broadcast %cst_114 : f32 to vector<16x16xf32>
    %245 = arith.mulf %243, %244 : vector<16x16xf32>
    %246 = arith.addf %245, %69 : vector<16x16xf32>
    %cst_115 = arith.constant dense<0xFF800000> : vector<16xf32>
    %247 = vector.multi_reduction <maximumf>, %246, %cst_115 [1] : vector<16x16xf32> to vector<16xf32>
    %248 = vector.shape_cast %247 : vector<16xf32> to vector<16x1xf32>
    %249 = vector.broadcast %248 : vector<16x1xf32> to vector<16x16xf32>
    %250 = arith.subf %246, %249 : vector<16x16xf32>
    %251 = math.exp %250 : vector<16x16xf32>
    %cst_116 = arith.constant dense<0.000000e+00> : vector<16xf32>
    %252 = vector.multi_reduction <add>, %251, %cst_116 [1] : vector<16x16xf32> to vector<16xf32>
    %253 = vector.shape_cast %252 : vector<16xf32> to vector<16x1xf32>
    %254 = tpu.reciprocal %253 {approx = true} : vector<16x1xf32> -> vector<16x1xf32>
    %255 = vector.broadcast %254 : vector<16x1xf32> to vector<16x16xf32>
    %256 = arith.mulf %251, %255 : vector<16x16xf32>
    %cst_117 = arith.constant dense<0.000000e+00> : vector<16x8xf32>
    %257 = tpu.matmul %256, %242, %cst_117 {dimension_numbers = #tpu.dot_dimension_numbers<[1], [0], [0], [1], [0, 0, 1, 1], [], []>} : vector<16x16xf32>, vector<16x8xf32>, vector<16x8xf32> -> vector<16x8xf32>
    %258 = vector.extract_strided_slice %239 {offsets = [0, 8], sizes = [16, 8], strides = [1, 1]} : vector<16x96xf32> to vector<16x8xf32>
    %259 = vector.extract_strided_slice %239 {offsets = [0, 40], sizes = [16, 8], strides = [1, 1]} : vector<16x96xf32> to vector<16x8xf32>
    %260 = vector.extract_strided_slice %239 {offsets = [0, 72], sizes = [16, 8], strides = [1, 1]} : vector<16x96xf32> to vector<16x8xf32>
    %cst_118 = arith.constant dense<0.000000e+00> : vector<16x16xf32>
    %261 = tpu.matmul %258, %259, %cst_118 {dimension_numbers = #tpu.dot_dimension_numbers<[1], [1], [0], [0], [0, 0, 1, 0], [], []>} : vector<16x8xf32>, vector<16x8xf32>, vector<16x16xf32> -> vector<16x16xf32>
    %cst_119 = arith.constant 0.353553385 : f32
    %262 = vector.broadcast %cst_119 : f32 to vector<16x16xf32>
    %263 = arith.mulf %261, %262 : vector<16x16xf32>
    %264 = arith.addf %263, %69 : vector<16x16xf32>
    %cst_120 = arith.constant dense<0xFF800000> : vector<16xf32>
    %265 = vector.multi_reduction <maximumf>, %264, %cst_120 [1] : vector<16x16xf32> to vector<16xf32>
    %266 = vector.shape_cast %265 : vector<16xf32> to vector<16x1xf32>
    %267 = vector.broadcast %266 : vector<16x1xf32> to vector<16x16xf32>
    %268 = arith.subf %264, %267 : vector<16x16xf32>
    %269 = math.exp %268 : vector<16x16xf32>
    %cst_121 = arith.constant dense<0.000000e+00> : vector<16xf32>
    %270 = vector.multi_reduction <add>, %269, %cst_121 [1] : vector<16x16xf32> to vector<16xf32>
    %271 = vector.shape_cast %270 : vector<16xf32> to vector<16x1xf32>
    %272 = tpu.reciprocal %271 {approx = true} : vector<16x1xf32> -> vector<16x1xf32>
    %273 = vector.broadcast %272 : vector<16x1xf32> to vector<16x16xf32>
    %274 = arith.mulf %269, %273 : vector<16x16xf32>
    %cst_122 = arith.constant dense<0.000000e+00> : vector<16x8xf32>
    %275 = tpu.matmul %274, %260, %cst_122 {dimension_numbers = #tpu.dot_dimension_numbers<[1], [0], [0], [1], [0, 0, 1, 1], [], []>} : vector<16x16xf32>, vector<16x8xf32>, vector<16x8xf32> -> vector<16x8xf32>
    %276 = vector.extract_strided_slice %239 {offsets = [0, 16], sizes = [16, 8], strides = [1, 1]} : vector<16x96xf32> to vector<16x8xf32>
    %277 = vector.extract_strided_slice %239 {offsets = [0, 48], sizes = [16, 8], strides = [1, 1]} : vector<16x96xf32> to vector<16x8xf32>
    %278 = vector.extract_strided_slice %239 {offsets = [0, 80], sizes = [16, 8], strides = [1, 1]} : vector<16x96xf32> to vector<16x8xf32>
    %cst_123 = arith.constant dense<0.000000e+00> : vector<16x16xf32>
    %279 = tpu.matmul %276, %277, %cst_123 {dimension_numbers = #tpu.dot_dimension_numbers<[1], [1], [0], [0], [0, 0, 1, 0], [], []>} : vector<16x8xf32>, vector<16x8xf32>, vector<16x16xf32> -> vector<16x16xf32>
    %cst_124 = arith.constant 0.353553385 : f32
    %280 = vector.broadcast %cst_124 : f32 to vector<16x16xf32>
    %281 = arith.mulf %279, %280 : vector<16x16xf32>
    %282 = arith.addf %281, %69 : vector<16x16xf32>
    %cst_125 = arith.constant dense<0xFF800000> : vector<16xf32>
    %283 = vector.multi_reduction <maximumf>, %282, %cst_125 [1] : vector<16x16xf32> to vector<16xf32>
    %284 = vector.shape_cast %283 : vector<16xf32> to vector<16x1xf32>
    %285 = vector.broadcast %284 : vector<16x1xf32> to vector<16x16xf32>
    %286 = arith.subf %282, %285 : vector<16x16xf32>
    %287 = math.exp %286 : vector<16x16xf32>
    %cst_126 = arith.constant dense<0.000000e+00> : vector<16xf32>
    %288 = vector.multi_reduction <add>, %287, %cst_126 [1] : vector<16x16xf32> to vector<16xf32>
    %289 = vector.shape_cast %288 : vector<16xf32> to vector<16x1xf32>
    %290 = tpu.reciprocal %289 {approx = true} : vector<16x1xf32> -> vector<16x1xf32>
    %291 = vector.broadcast %290 : vector<16x1xf32> to vector<16x16xf32>
    %292 = arith.mulf %287, %291 : vector<16x16xf32>
    %cst_127 = arith.constant dense<0.000000e+00> : vector<16x8xf32>
    %293 = tpu.matmul %292, %278, %cst_127 {dimension_numbers = #tpu.dot_dimension_numbers<[1], [0], [0], [1], [0, 0, 1, 1], [], []>} : vector<16x16xf32>, vector<16x8xf32>, vector<16x8xf32> -> vector<16x8xf32>
    %294 = vector.extract_strided_slice %239 {offsets = [0, 24], sizes = [16, 8], strides = [1, 1]} : vector<16x96xf32> to vector<16x8xf32>
    %295 = vector.extract_strided_slice %239 {offsets = [0, 56], sizes = [16, 8], strides = [1, 1]} : vector<16x96xf32> to vector<16x8xf32>
    %296 = vector.extract_strided_slice %239 {offsets = [0, 88], sizes = [16, 8], strides = [1, 1]} : vector<16x96xf32> to vector<16x8xf32>
    %cst_128 = arith.constant dense<0.000000e+00> : vector<16x16xf32>
    %297 = tpu.matmul %294, %295, %cst_128 {dimension_numbers = #tpu.dot_dimension_numbers<[1], [1], [0], [0], [0, 0, 1, 0], [], []>} : vector<16x8xf32>, vector<16x8xf32>, vector<16x16xf32> -> vector<16x16xf32>
    %cst_129 = arith.constant 0.353553385 : f32
    %298 = vector.broadcast %cst_129 : f32 to vector<16x16xf32>
    %299 = arith.mulf %297, %298 : vector<16x16xf32>
    %300 = arith.addf %299, %69 : vector<16x16xf32>
    %cst_130 = arith.constant dense<0xFF800000> : vector<16xf32>
    %301 = vector.multi_reduction <maximumf>, %300, %cst_130 [1] : vector<16x16xf32> to vector<16xf32>
    %302 = vector.shape_cast %301 : vector<16xf32> to vector<16x1xf32>
    %303 = vector.broadcast %302 : vector<16x1xf32> to vector<16x16xf32>
    %304 = arith.subf %300, %303 : vector<16x16xf32>
    %305 = math.exp %304 : vector<16x16xf32>
    %cst_131 = arith.constant dense<0.000000e+00> : vector<16xf32>
    %306 = vector.multi_reduction <add>, %305, %cst_131 [1] : vector<16x16xf32> to vector<16xf32>
    %307 = vector.shape_cast %306 : vector<16xf32> to vector<16x1xf32>
    %308 = tpu.reciprocal %307 {approx = true} : vector<16x1xf32> -> vector<16x1xf32>
    %309 = vector.broadcast %308 : vector<16x1xf32> to vector<16x16xf32>
    %310 = arith.mulf %305, %309 : vector<16x16xf32>
    %cst_132 = arith.constant dense<0.000000e+00> : vector<16x8xf32>
    %311 = tpu.matmul %310, %296, %cst_132 {dimension_numbers = #tpu.dot_dimension_numbers<[1], [0], [0], [1], [0, 0, 1, 1], [], []>} : vector<16x16xf32>, vector<16x8xf32>, vector<16x8xf32> -> vector<16x8xf32>
    %312 = tpu.concatenate %256, %274, %292, %310 in 1 : vector<16x16xf32>, vector<16x16xf32>, vector<16x16xf32>, vector<16x16xf32> -> vector<16x64xf32>
    %c1_133 = arith.constant 1 : index
    %c0_134 = arith.constant 0 : index
    %c0_135 = arith.constant 0 : index
    %313 = vector.load %arg23[%c1_133, %c0_134, %c0_135] : memref<2x16x64xf32, #tpu.memory_space<vmem>>, vector<1x16x64xf32>
    %314 = vector.shape_cast %313 : vector<1x16x64xf32> to vector<16x64xf32>
    %315 = vector.shape_cast %312 : vector<16x64xf32> to vector<1x16x64xf32>
    tpu.vector_store %arg23[%c1_133, %c0_134, %c0_135], %315 {strides = array<i32>} : memref<2x16x64xf32, #tpu.memory_space<vmem>>, vector<1x16x64xf32>,
    %316 = tpu.concatenate %257, %275, %293, %311 in 1 : vector<16x8xf32>, vector<16x8xf32>, vector<16x8xf32>, vector<16x8xf32> -> vector<16x32xf32>
    %c1_136 = arith.constant 1 : index
    %c0_137 = arith.constant 0 : index
    %c0_138 = arith.constant 0 : index
    %317 = vector.load %arg11[%c1_136, %c0_137, %c0_138] : memref<2x32x32xf32, #tpu.memory_space<vmem>>, vector<1x32x32xf32>
    %318 = vector.shape_cast %317 : vector<1x32x32xf32> to vector<32x32xf32>
    %cst_139 = arith.constant dense<0.000000e+00> : vector<16x32xf32>
    %319 = tpu.matmul %316, %318, %cst_139 {dimension_numbers = #tpu.dot_dimension_numbers<[1], [0], [0], [1], [0, 0, 1, 1], [], []>} : vector<16x32xf32>, vector<32x32xf32>, vector<16x32xf32> -> vector<16x32xf32>
    %c1_140 = arith.constant 1 : index
    %c0_141 = arith.constant 0 : index
    %c0_142 = arith.constant 0 : index
    %320 = vector.load %arg12[%c1_140, %c0_141, %c0_142] : memref<2x1x32xf32, #tpu.memory_space<vmem>>, vector<1x1x32xf32>
    %321 = vector.shape_cast %320 : vector<1x1x32xf32> to vector<1x32xf32>
    %322 = vector.broadcast %321 : vector<1x32xf32> to vector<16x32xf32>
    %323 = arith.addf %319, %322 : vector<16x32xf32>
    %324 = arith.addf %232, %323 : vector<16x32xf32>
    %c1_143 = arith.constant 1 : index
    %c0_144 = arith.constant 0 : index
    %c0_145 = arith.constant 0 : index
    %325 = vector.load %arg13[%c1_143, %c0_144, %c0_145] : memref<2x1x32xf32, #tpu.memory_space<vmem>>, vector<1x1x32xf32>
    %326 = vector.shape_cast %325 : vector<1x1x32xf32> to vector<1x32xf32>
    %c1_146 = arith.constant 1 : index
    %c0_147 = arith.constant 0 : index
    %c0_148 = arith.constant 0 : index
    %327 = vector.load %arg14[%c1_146, %c0_147, %c0_148] : memref<2x1x32xf32, #tpu.memory_space<vmem>>, vector<1x1x32xf32>
    %328 = vector.shape_cast %327 : vector<1x1x32xf32> to vector<1x32xf32>
    %cst_149 = arith.constant dense<0.000000e+00> : vector<16xf32>
    %329 = vector.multi_reduction <add>, %324, %cst_149 [1] : vector<16x32xf32> to vector<16xf32>
    %330 = vector.shape_cast %329 : vector<16xf32> to vector<16x1xf32>
    %cst_150 = arith.constant 3.200000e+01 : f32
    %331 = vector.broadcast %cst_150 : f32 to vector<16x1xf32>
    %332 = arith.divf %330, %331 : vector<16x1xf32>
    %333 = vector.broadcast %332 : vector<16x1xf32> to vector<16x32xf32>
    %334 = arith.subf %324, %333 : vector<16x32xf32>
    %335 = arith.mulf %334, %334 : vector<16x32xf32>
    %cst_151 = arith.constant dense<0.000000e+00> : vector<16xf32>
    %336 = vector.multi_reduction <add>, %335, %cst_151 [1] : vector<16x32xf32> to vector<16xf32>
    %337 = vector.shape_cast %336 : vector<16xf32> to vector<16x1xf32>
    %cst_152 = arith.constant 3.200000e+01 : f32
    %338 = vector.broadcast %cst_152 : f32 to vector<16x1xf32>
    %339 = arith.divf %337, %338 : vector<16x1xf32>
    %cst_153 = arith.constant 9.99999996E-13 : f32
    %340 = vector.broadcast %cst_153 : f32 to vector<16x1xf32>
    %341 = arith.addf %339, %340 : vector<16x1xf32>
    %342 = math.rsqrt %341 : vector<16x1xf32>
    %343 = vector.broadcast %342 : vector<16x1xf32> to vector<16x32xf32>
    %344 = arith.mulf %334, %343 : vector<16x32xf32>
    %345 = vector.broadcast %326 : vector<1x32xf32> to vector<16x32xf32>
    %346 = arith.mulf %345, %344 : vector<16x32xf32>
    %347 = vector.broadcast %328 : vector<1x32xf32> to vector<16x32xf32>
    %348 = arith.addf %346, %347 : vector<16x32xf32>
    %c1_154 = arith.constant 1 : index
    %c0_155 = arith.constant 0 : index
    %c0_156 = arith.constant 0 : index
    %349 = vector.load %arg15[%c1_154, %c0_155, %c0_156] : memref<2x32x64xf32, #tpu.memory_space<vmem>>, vector<1x32x64xf32>
    %350 = vector.shape_cast %349 : vector<1x32x64xf32> to vector<32x64xf32>
    %cst_157 = arith.constant dense<0.000000e+00> : vector<16x64xf32>
    %351 = tpu.matmul %348, %350, %cst_157 {dimension_numbers = #tpu.dot_dimension_numbers<[1], [0], [0], [1], [0, 0, 1, 1], [], []>} : vector<16x32xf32>, vector<32x64xf32>, vector<16x64xf32> -> vector<16x64xf32>
    %c1_158 = arith.constant 1 : index
    %c0_159 = arith.constant 0 : index
    %c0_160 = arith.constant 0 : index
    %352 = vector.load %arg16[%c1_158, %c0_159, %c0_160] : memref<2x1x64xf32, #tpu.memory_space<vmem>>, vector<1x1x64xf32>
    %353 = vector.shape_cast %352 : vector<1x1x64xf32> to vector<1x64xf32>
    %354 = vector.broadcast %353 : vector<1x64xf32> to vector<16x64xf32>
    %355 = arith.addf %351, %354 : vector<16x64xf32>
    %cst_161 = arith.constant 5.000000e-01 : f32
    %356 = vector.broadcast %cst_161 : f32 to vector<16x64xf32>
    %357 = arith.mulf %355, %356 : vector<16x64xf32>
    %cst_162 = arith.constant 1.41421354 : f32
    %358 = vector.broadcast %cst_162 : f32 to vector<16x64xf32>
    %359 = arith.divf %355, %358 : vector<16x64xf32>
    %360 = math.erf %359 : vector<16x64xf32>
    %cst_163 = arith.constant 1.000000e+00 : f32
    %361 = vector.broadcast %cst_163 : f32 to vector<16x64xf32>
    %362 = arith.addf %361, %360 : vector<16x64xf32>
    %363 = arith.mulf %357, %362 : vector<16x64xf32>
    %c1_164 = arith.constant 1 : index
    %c0_165 = arith.constant 0 : index
    %c0_166 = arith.constant 0 : index
    %364 = vector.load %arg17[%c1_164, %c0_165, %c0_166] : memref<2x64x32xf32, #tpu.memory_space<vmem>>, vector<1x64x32xf32>
    %365 = vector.shape_cast %364 : vector<1x64x32xf32> to vector<64x32xf32>
    %cst_167 = arith.constant dense<0.000000e+00> : vector<16x32xf32>
    %366 = tpu.matmul %363, %365, %cst_167 {dimension_numbers = #tpu.dot_dimension_numbers<[1], [0], [0], [1], [0, 0, 1, 1], [], []>} : vector<16x64xf32>, vector<64x32xf32>, vector<16x32xf32> -> vector<16x32xf32>
    %c1_168 = arith.constant 1 : index
    %c0_169 = arith.constant 0 : index
    %c0_170 = arith.constant 0 : index
    %367 = vector.load %arg18[%c1_168, %c0_169, %c0_170] : memref<2x1x32xf32, #tpu.memory_space<vmem>>, vector<1x1x32xf32>
    %368 = vector.shape_cast %367 : vector<1x1x32xf32> to vector<1x32xf32>
    %369 = vector.broadcast %368 : vector<1x32xf32> to vector<16x32xf32>
    %370 = arith.addf %366, %369 : vector<16x32xf32>
    %371 = arith.addf %348, %370 : vector<16x32xf32>
    %c1_171 = arith.constant 1 : index
    %c0_172 = arith.constant 0 : index
    %c0_173 = arith.constant 0 : index
    %372 = vector.load %arg19[%c1_171, %c0_172, %c0_173] : memref<2x1x32xf32, #tpu.memory_space<vmem>>, vector<1x1x32xf32>
    %373 = vector.shape_cast %372 : vector<1x1x32xf32> to vector<1x32xf32>
    %c1_174 = arith.constant 1 : index
    %c0_175 = arith.constant 0 : index
    %c0_176 = arith.constant 0 : index
    %374 = vector.load %arg20[%c1_174, %c0_175, %c0_176] : memref<2x1x32xf32, #tpu.memory_space<vmem>>, vector<1x1x32xf32>
    %375 = vector.shape_cast %374 : vector<1x1x32xf32> to vector<1x32xf32>
    %cst_177 = arith.constant dense<0.000000e+00> : vector<16xf32>
    %376 = vector.multi_reduction <add>, %371, %cst_177 [1] : vector<16x32xf32> to vector<16xf32>
    %377 = vector.shape_cast %376 : vector<16xf32> to vector<16x1xf32>
    %cst_178 = arith.constant 3.200000e+01 : f32
    %378 = vector.broadcast %cst_178 : f32 to vector<16x1xf32>
    %379 = arith.divf %377, %378 : vector<16x1xf32>
    %380 = vector.broadcast %379 : vector<16x1xf32> to vector<16x32xf32>
    %381 = arith.subf %371, %380 : vector<16x32xf32>
    %382 = arith.mulf %381, %381 : vector<16x32xf32>
    %cst_179 = arith.constant dense<0.000000e+00> : vector<16xf32>
    %383 = vector.multi_reduction <add>, %382, %cst_179 [1] : vector<16x32xf32> to vector<16xf32>
    %384 = vector.shape_cast %383 : vector<16xf32> to vector<16x1xf32>
    %cst_180 = arith.constant 3.200000e+01 : f32
    %385 = vector.broadcast %cst_180 : f32 to vector<16x1xf32>
    %386 = arith.divf %384, %385 : vector<16x1xf32>
    %cst_181 = arith.constant 9.99999996E-13 : f32
    %387 = vector.broadcast %cst_181 : f32 to vector<16x1xf32>
    %388 = arith.addf %386, %387 : vector<16x1xf32>
    %389 = math.rsqrt %388 : vector<16x1xf32>
    %390 = vector.broadcast %389 : vector<16x1xf32> to vector<16x32xf32>
    %391 = arith.mulf %381, %390 : vector<16x32xf32>
    %392 = vector.broadcast %373 : vector<1x32xf32> to vector<16x32xf32>
    %393 = arith.mulf %392, %391 : vector<16x32xf32>
    %394 = vector.broadcast %375 : vector<1x32xf32> to vector<16x32xf32>
    %395 = arith.addf %393, %394 : vector<16x32xf32>
    %c0_182 = arith.constant 0 : index
    %c0_183 = arith.constant 0 : index
    %396 = vector.load %arg21[%c0_182, %c0_183] : memref<16x32xf32, #tpu.memory_space<vmem>>, vector<16x32xf32>
    tpu.vector_store %arg21[%c0_182, %c0_183], %395 {strides = array<i32>} : memref<16x32xf32, #tpu.memory_space<vmem>>, vector<16x32xf32>,
    return
  }
}

</mosaic_0001>

<llo_original>
// kernel: transformer_forward.1
$region0: #{transformer_forward.1}
  #allocation0 [shape = 'u32[]', space=smem, size = 0x4, offset = 0x4, fixed_abs, tag = 'smem constant byte address 0x4 - core index']
  #allocation1 [shape = 'u32[72,128]{1,0:T(1,128)}', space=vmem, size = 0x9000, scoped, tag = 'internal scratch']
  %s0 = inlined_call_operand.vmem [shape: f32[16,32], index: 0, kind: input, shape index: {}]
  %s1 = inlined_call_operand.vmem [shape: f32[8,1], index: 1, kind: input, shape index: {}]
  %s2 = inlined_call_operand.vmem [shape: f32[8,1], index: 2, kind: input, shape index: {}]
  %s3 = inlined_call_operand.vmem [shape: f32[8,1], index: 3, kind: input, shape index: {}]
  %s4 = inlined_call_operand.vmem [shape: f32[3,32], index: 4, kind: input, shape index: {}]
  %s5 = inlined_call_operand.vmem [shape: f32[1,32], index: 5, kind: input, shape index: {}]
  %s6 = inlined_call_operand.vmem [shape: f32[1,16], index: 6, kind: input, shape index: {}]
  %s7 = inlined_call_operand.vmem [shape: f32[1,32], index: 7, kind: input, shape index: {}]
  %s8 = inlined_call_operand.vmem [shape: f32[1,32], index: 8, kind: input, shape index: {}]
  %s9 = inlined_call_operand.vmem [shape: f32[2,32,96], index: 9, kind: input, shape index: {}]
  %s10 = inlined_call_operand.vmem [shape: f32[2,1,96], index: 10, kind: input, shape index: {}]
  %s11 = inlined_call_operand.vmem [shape: f32[2,32,32], index: 11, kind: input, shape index: {}]
  %s12 = inlined_call_operand.vmem [shape: f32[2,1,32], index: 12, kind: input, shape index: {}]
  %s13 = inlined_call_operand.vmem [shape: f32[2,1,32], index: 13, kind: input, shape index: {}]
  %s14 = inlined_call_operand.vmem [shape: f32[2,1,32], index: 14, kind: input, shape index: {}]
  %s15 = inlined_call_operand.vmem [shape: f32[2,32,64], index: 15, kind: input, shape index: {}]
  %s16 = inlined_call_operand.vmem [shape: f32[2,1,64], index: 16, kind: input, shape index: {}]
  %s17 = inlined_call_operand.vmem [shape: f32[2,64,32], index: 17, kind: input, shape index: {}]
  %s18 = inlined_call_operand.vmem [shape: f32[2,1,32], index: 18, kind: input, shape index: {}]
  %s19 = inlined_call_operand.vmem [shape: f32[2,1,32], index: 19, kind: input, shape index: {}]
  %s20 = inlined_call_operand.vmem [shape: f32[2,1,32], index: 20, kind: input, shape index: {}]
  %s21 = inlined_call_operand.hbm [shape: f32[16,32], index: 21, kind: output, shape index: {0}]
  %s22 = inlined_call_operand.hbm [shape: f32[16,32], index: 22, kind: output, shape index: {1}]
  %s23 = inlined_call_operand.vmem [shape: f32[2,16,64], index: 23, kind: output, shape index: {2}]
  %24 = xla_tuple %s21, %s22, %s23
  %s25 = sld [smem:[#allocation0]]
  $region110: #{transformer_forward.1} parent=0
    _
  %s27 = ssub.s32 1, %s25
  %s28 = scalar_select 0, %s27, %s25
  $region1: #{transformer_forward.1} parent=0
    #allocation2 [shape = 'u8[8192]{0}', space=vmem, size = 0x2000, scoped, tag = 'output window, operand 0, single buffered']
    #allocation3 [shape = 's32[1]{0}', space=sflag, size = 0x4, scoped, tag = 'scoped memory for transformer_forward.1']
    #allocation4 [shape = 'u8[8192]{0}', space=vmem, size = 0x2000, scoped, tag = 'output window, operand 1, single buffered']
    #allocation5 [shape = 's32[1]{0}', space=sflag, size = 0x4, scoped, tag = 'scoped memory for transformer_forward.1']
    %29 = vsyncpa [#allocation3], 0
    %30 = vsyncpa [#allocation5], 0
    // Predicated region
    $region2: #{transformer_forward.1} parent=1 // pred_check
      _
    $region3: #{transformer_forward.1} parent=1 // pred_check_branch
      %32 = sbr.rel (0) target = $region5
    $region4: #{transformer_forward.1} parent=1 // pred_region
      _
    $region5: #{transformer_forward.1} parent=1 // pred_fallthru
      _
    // Predicated region
    $region6: #{transformer_forward.1} parent=1 // pred_check
      _
    $region7: #{transformer_forward.1} parent=1 // pred_check_branch
      %34 = sbr.rel (0) target = $region9
    $region8: #{transformer_forward.1} parent=1 // pred_region
      _
    $region9: #{transformer_forward.1} parent=1 // pred_fallthru
      _
    // Predicated region
    $region10: #{transformer_forward.1} parent=1 // pred_check
      _
    $region11: #{transformer_forward.1} parent=1 // pred_check_branch
      %36 = sbr.rel (0) target = $region13
    $region12: #{transformer_forward.1} parent=1 // pred_region
      _
    $region13: #{transformer_forward.1} parent=1 // pred_fallthru
      _
    // Predicated region
    $region14: #{transformer_forward.1} parent=1 // pred_check
      _
    $region15: #{transformer_forward.1} parent=1 // pred_check_branch
      %38 = sbr.rel (0) target = $region17
    $region16: #{transformer_forward.1} parent=1 // pred_region
      _
    $region17: #{transformer_forward.1} parent=1 // pred_fallthru
      _
    // Predicated region
    $region18: #{transformer_forward.1} parent=1 // pred_check
      _
    $region19: #{transformer_forward.1} parent=1 // pred_check_branch
      %40 = sbr.rel (0) target = $region21
    $region20: #{transformer_forward.1} parent=1 // pred_region
      _
    $region21: #{transformer_forward.1} parent=1 // pred_fallthru
      _
    // Predicated region
    $region22: #{transformer_forward.1} parent=1 // pred_check
      _
    $region23: #{transformer_forward.1} parent=1 // pred_check_branch
      %42 = sbr.rel (0) target = $region25
    $region24: #{transformer_forward.1} parent=1 // pred_region
      _
    $region25: #{transformer_forward.1} parent=1 // pred_fallthru
      _
    // Predicated region
    $region26: #{transformer_forward.1} parent=1 // pred_check
      _
    $region27: #{transformer_forward.1} parent=1 // pred_check_branch
      %44 = sbr.rel (0) target = $region29
    $region28: #{transformer_forward.1} parent=1 // pred_region
      _
    $region29: #{transformer_forward.1} parent=1 // pred_fallthru
      _
    // Predicated region
    $region30: #{transformer_forward.1} parent=1 // pred_check
      _
    $region31: #{transformer_forward.1} parent=1 // pred_check_branch
      %46 = sbr.rel (0) target = $region33
    $region32: #{transformer_forward.1} parent=1 // pred_region
      _
    $region33: #{transformer_forward.1} parent=1 // pred_fallthru
      _
    // Predicated region
    $region34: #{transformer_forward.1} parent=1 // pred_check
      _
    $region35: #{transformer_forward.1} parent=1 // pred_check_branch
      %48 = sbr.rel (0) target = $region37
    $region36: #{transformer_forward.1} parent=1 // pred_region
      _
    $region37: #{transformer_forward.1} parent=1 // pred_fallthru
      _
    // Predicated region
    $region38: #{transformer_forward.1} parent=1 // pred_check
      _
    $region39: #{transformer_forward.1} parent=1 // pred_check_branch
      %50 = sbr.rel (0) target = $region41
    $region40: #{transformer_forward.1} parent=1 // pred_region
      _
    $region41: #{transformer_forward.1} parent=1 // pred_fallthru
      _
    // Predicated region
    $region42: #{transformer_forward.1} parent=1 // pred_check
      _
    $region43: #{transformer_forward.1} parent=1 // pred_check_branch
      %52 = sbr.rel (0) target = $region45
    $region44: #{transformer_forward.1} parent=1 // pred_region
      _
    $region45: #{transformer_forward.1} parent=1 // pred_fallthru
      _
    // Predicated region
    $region46: #{transformer_forward.1} parent=1 // pred_check
      _
    $region47: #{transformer_forward.1} parent=1 // pred_check_branch
      %54 = sbr.rel (0) target = $region49
    $region48: #{transformer_forward.1} parent=1 // pred_region
      _
    $region49: #{transformer_forward.1} parent=1 // pred_fallthru
      _
    // Predicated region
    $region50: #{transformer_forward.1} parent=1 // pred_check
      _
    $region51: #{transformer_forward.1} parent=1 // pred_check_branch
      %56 = sbr.rel (0) target = $region53
    $region52: #{transformer_forward.1} parent=1 // pred_region
      _
    $region53: #{transformer_forward.1} parent=1 // pred_fallthru
      _
    // Predicated region
    $region54: #{transformer_forward.1} parent=1 // pred_check
      _
    $region55: #{transformer_forward.1} parent=1 // pred_check_branch
      %58 = sbr.rel (0) target = $region57
    $region56: #{transformer_forward.1} parent=1 // pred_region
      _
    $region57: #{transformer_forward.1} parent=1 // pred_fallthru
      _
    // Predicated region
    $region58: #{transformer_forward.1} parent=1 // pred_check
      _
    $region59: #{transformer_forward.1} parent=1 // pred_check_branch
      %60 = sbr.rel (0) target = $region61
    $region60: #{transformer_forward.1} parent=1 // pred_region
      _
    $region61: #{transformer_forward.1} parent=1 // pred_fallthru
      _
    // Predicated region
    $region62: #{transformer_forward.1} parent=1 // pred_check
      _
    $region63: #{transformer_forward.1} parent=1 // pred_check_branch
      %62 = sbr.rel (0) target = $region65
    $region64: #{transformer_forward.1} parent=1 // pred_region
      _
    $region65: #{transformer_forward.1} parent=1 // pred_fallthru
      _
    // Predicated region
    $region66: #{transformer_forward.1} parent=1 // pred_check
      _
    $region67: #{transformer_forward.1} parent=1 // pred_check_branch
      %64 = sbr.rel (0) target = $region69
    $region68: #{transformer_forward.1} parent=1 // pred_region
      _
    $region69: #{transformer_forward.1} parent=1 // pred_fallthru
      _
    // Predicated region
    $region70: #{transformer_forward.1} parent=1 // pred_check
      _
    $region71: #{transformer_forward.1} parent=1 // pred_check_branch
      %66 = sbr.rel (0) target = $region73
    $region72: #{transformer_forward.1} parent=1 // pred_region
      _
    $region73: #{transformer_forward.1} parent=1 // pred_fallthru
      _
    // Predicated region
    $region74: #{transformer_forward.1} parent=1 // pred_check
      _
    $region75: #{transformer_forward.1} parent=1 // pred_check_branch
      %68 = sbr.rel (0) target = $region77
    $region76: #{transformer_forward.1} parent=1 // pred_region
      _
    $region77: #{transformer_forward.1} parent=1 // pred_fallthru
      _
    // Predicated region
    $region78: #{transformer_forward.1} parent=1 // pred_check
      _
    $region79: #{transformer_forward.1} parent=1 // pred_check_branch
      %70 = sbr.rel (0) target = $region81
    $region80: #{transformer_forward.1} parent=1 // pred_region
      _
    $region81: #{transformer_forward.1} parent=1 // pred_fallthru
      _
    // Predicated region
    $region82: #{transformer_forward.1} parent=1 // pred_check
      _
    $region83: #{transformer_forward.1} parent=1 // pred_check_branch
      %72 = sbr.rel (0) target = $region85
    $region84: #{transformer_forward.1} parent=1 // pred_region
      _
    $region85: #{transformer_forward.1} parent=1 // pred_fallthru
      _
    %v73 = vld [vmem:[%s4] sm:$0x7]
    %v74 = vld [vmem:[%s1] sm:$0xff]
    %v75 = vmul.f32 %v74, 0.06666667
    %77 = vset.pattern.permute.xlu0 0
    %78 = vperm.xlu0 %77, %v75
    %v79 = vpop.permute.xlu0 %78
    %v81 = vperm.slane %v73, 0
    %v82 = vmul.f32 %v79, %v81
    %v83 = vld [vmem:[%s2] sm:$0xff]
    %v84 = vmul.f32 %v83, 0.09090909
    %86 = vset.pattern.permute.xlu0 0
    %87 = vperm.xlu0 %86, %v84
    %v88 = vpop.permute.xlu0 %87
    %v90 = vperm.slane %v73, 1
    %v91 = vmul.f32 %v88, %v90
    %v92 = vadd.f32 %v82, %v91
    %v93 = vld [vmem:[%s3] sm:$0xff]
    %v94 = vmul.f32 %v93, 0.09090909
    %96 = vset.pattern.permute.xlu0 0
    %97 = vperm.xlu0 %96, %v94
    %v98 = vpop.permute.xlu0 %97
    %v100 = vperm.slane %v73, 2
    %v101 = vmul.f32 %v98, %v100
    %v102 = vadd.f32 %v92, %v101
    %v103 = vld [vmem:[%s5] sm:$0x1]
    %v105 = vperm.slane %v103, 0
    %v107 = vadd.f32 %v102, %v105
    %v108 = vld [vmem:[%s0] sm:$0xff]
    %v109 = vld [vmem:[%s0 + $0x8] sm:$0xff]
    %v110 = vadd.f32 %v108, %v107
    %v111 = vadd.f32 %v109, %v107
    %v112 = vld [vmem:[%s7] sm:$0x1]
    %v113 = vld [vmem:[%s8] sm:$0x1]
    %vm114 = vcmask 261120
    %v115 = vsel %vm114, %v110, 0.0
    %116 = vadd.xlane.f32.xlu0 %v115
    %v117 = vpop.xlane.xlu0 %116
    %v118 = vsel %vm114, %v111, 0.0
    %119 = vadd.xlane.f32.xlu0 %v118
    %v120 = vpop.xlane.xlu0 %119
    %v121 = vrcp.pop 32.0
    %v122 = vmul.f32 32.0, %v121
    %v123 = vsub.f32 1.0, %v122
    %v124 = vmul.f32 %v121, %v123
    %v125 = vadd.f32 %v121, %v124
    %vm126 = vweird.f32 %v121
    %v127 = vsel %vm126, %v121, %v125
    %v128 = vmul.f32 %v117, %v127
    %v129 = vmul.f32 %v120, %v127
    %v130 = vsub.f32 %v110, %v128
    %v131 = vsub.f32 %v111, %v129
    %v132 = vmul.f32 %v130, %v130
    %v133 = vmul.f32 %v131, %v131
    %v134 = vsel %vm114, %v132, 0.0
    %135 = vadd.xlane.f32.xlu0 %v134
    %v136 = vpop.xlane.xlu0 %135
    %v137 = vsel %vm114, %v133, 0.0
    %138 = vadd.xlane.f32.xlu0 %v137
    %v139 = vpop.xlane.xlu0 %138
    %v140 = vmul.f32 %v136, %v127
    %v141 = vmul.f32 %v139, %v127
    %v142 = vadd.f32 %v140, 1e-12
    %v143 = vadd.f32 %v141, 1e-12
    %v144 = vrsqrt.pop %v142
    %v145 = vmul.f32 %v144, %v142
    %v146 = vmul.f32 %v145, %v144
    %v147 = vmul.f32 0.5, %v146
    %v148 = vsub.f32 1.5, %v147
    %v149 = vmul.f32 %v144, %v148
    %vm150 = vweird.f32 %v142
    %vm151 = vweird.f32 %v144
    %vm152 = vmor %vm150, %vm151
    %v153 = vsel %vm152, %v144, %v149
    %v154 = vrsqrt.pop %v143
    %v155 = vmul.f32 %v154, %v143
    %v156 = vmul.f32 %v155, %v154
    %v157 = vmul.f32 0.5, %v156
    %v158 = vsub.f32 1.5, %v157
    %v159 = vmul.f32 %v154, %v158
    %vm160 = vweird.f32 %v143
    %vm161 = vweird.f32 %v154
    %vm162 = vmor %vm160, %vm161
    %v163 = vsel %vm162, %v154, %v159
    %v164 = vmul.f32 %v130, %v153
    %v165 = vmul.f32 %v131, %v163
    %v167 = vperm.slane %v112, 0
    %v169 = vmul.f32 %v167, %v164
    %v170 = vmul.f32 %v167, %v165
    %v172 = vperm.slane %v113, 0
    %v174 = vadd.f32 %v169, %v172
    %v175 = vadd.f32 %v170, %v172
    %176 = vst.msk [vmem:[#allocation4] sm:$0xff] %vm114, %v174
    %177 = vst.msk [vmem:[#allocation4 + $0x8] sm:$0xff] %vm114, %v175
    %v178 = vlaneseq
    %v179 = vshrl.u32 %v178, 7
    %v180 = vadd.s32 %v179, 8
    %v181 = vshra.s32 %v179, 3
    %v182 = vshra.s32 %v180, 3
    %v183 = vlaneseq
    %v184 = vand.u32 %v183, 127
    %v185 = vshra.s32 %v184, 3
    %vm186 = vcmp.eq.s32.totalorder %v181, %v185
    %vm187 = vcmp.eq.s32.totalorder %v182, %v185
    %v188 = vsel %vm186, 0.0, -10000.0
    %v189 = vsel %vm187, 0.0, -10000.0
    %v190 = vld [vmem:[%s6] sm:$0x1]
    %v191 = vsub.f32 1.0, %v190
    %v192 = vmul.f32 %v191, 10000.0
    %v194 = vperm.slane %v192, 0
    %v196 = vsub.f32 %v188, %v194
    %v197 = vsub.f32 %v189, %v194
    %v198 = vld [vmem:[%s9] sm:$0xff]
    %v199 = vld [vmem:[%s9 + $0x8] sm:$0xff]
    %v200 = vld [vmem:[%s9 + $0x10] sm:$0xff]
    %v201 = vld [vmem:[%s9 + $0x18] sm:$0xff]
    %v202 = vld [vmem:[%s10] sm:$0x1]
    %v204 = vperm.slane %v202, 0
    %v207 = vsel %vm114, %v174, 0
    %v210 = vsel %vm114, %v175, 0
    %212 = vmatpush.msra.mxu0 0.0
    %213 = vmatpush.msra.mxu0 0.0
    %214 = vmatpush.msra.mxu0 0.0
    %215 = vmatpush.msra.mxu0 0.0
    %216 = vmatpush.msra.mxu0 0.0
    %217 = vmatpush.msra.mxu0 0.0
    %218 = vmatpush.msra.mxu0 0.0
    %219 = vmatpush.msra.mxu0 0.0
    %220 = vmatpush.msra.mxu0 0.0
    %221 = vmatpush.msra.mxu0 0.0
    %222 = vmatpush.msra.mxu0 0.0
    %223 = vmatpush.msra.mxu0 0.0
    %224 = vmatpush.msra.mxu0 %v201
    %225 = vmatpush.msra.mxu0 %v200
    %226 = vmatpush.msra.mxu0 %v199
    %227 = vmatpush.msra.mxu0 %v198
    %228 = vmatmul.f32.gmra.mxu0 %v207
    %v229 = vpop.f32.mrf.mxu0
    %v230 = vadd.f32 %v204, %v229
    %231 = vmatmul.f32.gmra.mxu0 %v210
    %v232 = vpop.f32.mrf.mxu0
    %v233 = vadd.f32 %v204, %v232
    %234 = vdwg.mxu0
    %237 = vrot.lane.b32.xlu0 %v230, 96
    %v238 = vpop.permute.xlu0 %237
    %239 = vrot.lane.b32.xlu0 %v233, 96
    %v240 = vpop.permute.xlu0 %239
    %vm241 = vcmask 64512
    %v242 = vsel %vm241, %v230, 0
    %v244 = vsel %vm241, %v233, 0
    %v246 = vsel %vm241, %v238, 0
    %v248 = vsel %vm241, %v240, 0
    %250 = vmatpush.xpose.msra.mxu0 0.0
    %251 = vmatpush.xpose.msra.mxu0 0.0
    %252 = vmatpush.xpose.msra.mxu0 0.0
    %253 = vmatpush.xpose.msra.mxu0 0.0
    %254 = vmatpush.xpose.msra.mxu0 0.0
    %255 = vmatpush.xpose.msra.mxu0 0.0
    %256 = vmatpush.xpose.msra.mxu0 0.0
    %257 = vmatpush.xpose.msra.mxu0 0.0
    %258 = vmatpush.xpose.msra.mxu0 0.0
    %259 = vmatpush.xpose.msra.mxu0 0.0
    %260 = vmatpush.xpose.msra.mxu0 0.0
    %261 = vmatpush.xpose.msra.mxu0 0.0
    %262 = vmatpush.xpose.msra.mxu0 0.0
    %263 = vmatpush.xpose.msra.mxu0 0.0
    %264 = vmatpush.xpose.msra.mxu0 %v248
    %265 = vmatpush.xpose.msra.mxu0 %v246
    %266 = vmatmul.f32.gmra.mxu0 %v242
    %v267 = vpop.f32.mrf.mxu0
    %v268 = vadd.f32 0.0, %v267
    %269 = vmatmul.f32.gmra.mxu0 %v244
    %v270 = vpop.f32.mrf.mxu0
    %v271 = vadd.f32 0.0, %v270
    %272 = vdwg.mxu0
    %v273 = vmul.f32 %v268, 0.35355338
    %v274 = vmul.f32 %v271, 0.35355338
    %v275 = vadd.f32 %v273, %v196
    %v276 = vadd.f32 %v274, %v197
    %vm277 = vcmask 130048
    %v278 = vsel %vm277, %v275, -inf
    %279 = vmax.xlane.f32.xlu0 %v278
    %v280 = vpop.xlane.xlu0 %279
    %v281 = vsel %vm277, %v276, -inf
    %282 = vmax.xlane.f32.xlu0 %v281
    %v283 = vpop.xlane.xlu0 %282
    %v284 = vsub.f32 %v275, %v280
    %v285 = vsub.f32 %v276, %v283
    %v286 = vmul.f32 %v284, 1.442695
    %v287 = vpow.pop %v286
    %v288 = vmul.f32 %v285, 1.442695
    %v289 = vpow.pop %v288
    %v290 = vsel %vm277, %v287, 0.0
    %291 = vadd.xlane.f32.xlu0 %v290
    %v292 = vpop.xlane.xlu0 %291
    %v293 = vsel %vm277, %v289, 0.0
    %294 = vadd.xlane.f32.xlu0 %v293
    %v295 = vpop.xlane.xlu0 %294
    %v296 = vrcp.pop %v292
    %v297 = vrcp.pop %v295
    %v298 = vmul.f32 %v287, %v296
    %v299 = vmul.f32 %v289, %v297
    %300 = vrot.lane.b32.xlu0 %v230, 64
    %v301 = vpop.permute.xlu0 %300
    %302 = vrot.lane.b32.xlu0 %v233, 64
    %v303 = vpop.permute.xlu0 %302
    %v307 = vsel %vm277, %v298, 0
    %v310 = vsel %vm277, %v299, 0
    %312 = vmatpush.msra.mxu0 0.0
    %313 = vmatpush.msra.mxu0 0.0
    %314 = vmatpush.msra.mxu0 0.0
    %315 = vmatpush.msra.mxu0 0.0
    %316 = vmatpush.msra.mxu0 0.0
    %317 = vmatpush.msra.mxu0 0.0
    %318 = vmatpush.msra.mxu0 0.0
    %319 = vmatpush.msra.mxu0 0.0
    %320 = vmatpush.msra.mxu0 0.0
    %321 = vmatpush.msra.mxu0 0.0
    %322 = vmatpush.msra.mxu0 0.0
    %323 = vmatpush.msra.mxu0 0.0
    %324 = vmatpush.msra.mxu0 0.0
    %325 = vmatpush.msra.mxu0 0.0
    %326 = vmatpush.msra.mxu0 %v303
    %327 = vmatpush.msra.mxu0 %v301
    %328 = vmatmul.f32.gmra.mxu0 %v307
    %v329 = vpop.f32.mrf.mxu0
    %v330 = vadd.f32 0.0, %v329
    %331 = vmatmul.f32.gmra.mxu0 %v310
    %v332 = vpop.f32.mrf.mxu0
    %v333 = vadd.f32 0.0, %v332
    %334 = vdwg.mxu0
    %335 = vrot.lane.b32.xlu0 %v230, 120
    %v336 = vpop.permute.xlu0 %335
    %337 = vrot.lane.b32.xlu0 %v233, 120
    %v338 = vpop.permute.xlu0 %337
    %339 = vrot.lane.b32.xlu0 %v230, 88
    %v340 = vpop.permute.xlu0 %339
    %341 = vrot.lane.b32.xlu0 %v233, 88
    %v342 = vpop.permute.xlu0 %341
    %v343 = vsel %vm241, %v336, 0
    %v345 = vsel %vm241, %v338, 0
    %v347 = vsel %vm241, %v340, 0
    %v349 = vsel %vm241, %v342, 0
    %351 = vmatpush.xpose.msra.mxu0 0.0
    %352 = vmatpush.xpose.msra.mxu0 0.0
    %353 = vmatpush.xpose.msra.mxu0 0.0
    %354 = vmatpush.xpose.msra.mxu0 0.0
    %355 = vmatpush.xpose.msra.mxu0 0.0
    %356 = vmatpush.xpose.msra.mxu0 0.0
    %357 = vmatpush.xpose.msra.mxu0 0.0
    %358 = vmatpush.xpose.msra.mxu0 0.0
    %359 = vmatpush.xpose.msra.mxu0 0.0
    %360 = vmatpush.xpose.msra.mxu0 0.0
    %361 = vmatpush.xpose.msra.mxu0 0.0
    %362 = vmatpush.xpose.msra.mxu0 0.0
    %363 = vmatpush.xpose.msra.mxu0 0.0
    %364 = vmatpush.xpose.msra.mxu0 0.0
    %365 = vmatpush.xpose.msra.mxu0 %v349
    %366 = vmatpush.xpose.msra.mxu0 %v347
    %367 = vmatmul.f32.gmra.mxu0 %v343
    %v368 = vpop.f32.mrf.mxu0
    %v369 = vadd.f32 0.0, %v368
    %370 = vmatmul.f32.gmra.mxu0 %v345
    %v371 = vpop.f32.mrf.mxu0
    %v372 = vadd.f32 0.0, %v371
    %373 = vdwg.mxu0
    %v374 = vmul.f32 %v369, 0.35355338
    %v375 = vmul.f32 %v372, 0.35355338
    %v376 = vadd.f32 %v374, %v196
    %v377 = vadd.f32 %v375, %v197
    %v378 = vsel %vm277, %v376, -inf
    %379 = vmax.xlane.f32.xlu0 %v378
    %v380 = vpop.xlane.xlu0 %379
    %v381 = vsel %vm277, %v377, -inf
    %382 = vmax.xlane.f32.xlu0 %v381
    %v383 = vpop.xlane.xlu0 %382
    %v384 = vsub.f32 %v376, %v380
    %v385 = vsub.f32 %v377, %v383
    %v386 = vmul.f32 %v384, 1.442695
    %v387 = vpow.pop %v386
    %v388 = vmul.f32 %v385, 1.442695
    %v389 = vpow.pop %v388
    %v390 = vsel %vm277, %v387, 0.0
    %391 = vadd.xlane.f32.xlu0 %v390
    %v392 = vpop.xlane.xlu0 %391
    %v393 = vsel %vm277, %v389, 0.0
    %394 = vadd.xlane.f32.xlu0 %v393
    %v395 = vpop.xlane.xlu0 %394
    %v396 = vrcp.pop %v392
    %v397 = vrcp.pop %v395
    %v398 = vmul.f32 %v387, %v396
    %v399 = vmul.f32 %v389, %v397
    %400 = vrot.lane.b32.xlu0 %v230, 56
    %v401 = vpop.permute.xlu0 %400
    %402 = vrot.lane.b32.xlu0 %v233, 56
    %v403 = vpop.permute.xlu0 %402
    %v407 = vsel %vm277, %v398, 0
    %v410 = vsel %vm277, %v399, 0
    %412 = vmatpush.msra.mxu0 0.0
    %413 = vmatpush.msra.mxu0 0.0
    %414 = vmatpush.msra.mxu0 0.0
    %415 = vmatpush.msra.mxu0 0.0
    %416 = vmatpush.msra.mxu0 0.0
    %417 = vmatpush.msra.mxu0 0.0
    %418 = vmatpush.msra.mxu0 0.0
    %419 = vmatpush.msra.mxu0 0.0
    %420 = vmatpush.msra.mxu0 0.0
    %421 = vmatpush.msra.mxu0 0.0
    %422 = vmatpush.msra.mxu0 0.0
    %423 = vmatpush.msra.mxu0 0.0
    %424 = vmatpush.msra.mxu0 0.0
    %425 = vmatpush.msra.mxu0 0.0
    %426 = vmatpush.msra.mxu0 %v403
    %427 = vmatpush.msra.mxu0 %v401
    %428 = vmatmul.f32.gmra.mxu0 %v407
    %v429 = vpop.f32.mrf.mxu0
    %v430 = vadd.f32 0.0, %v429
    %431 = vmatmul.f32.gmra.mxu0 %v410
    %v432 = vpop.f32.mrf.mxu0
    %v433 = vadd.f32 0.0, %v432
    %434 = vdwg.mxu0
    %435 = vrot.lane.b32.xlu0 %v230, 112
    %v436 = vpop.permute.xlu0 %435
    %437 = vrot.lane.b32.xlu0 %v233, 112
    %v438 = vpop.permute.xlu0 %437
    %439 = vrot.lane.b32.xlu0 %v230, 80
    %v440 = vpop.permute.xlu0 %439
    %441 = vrot.lane.b32.xlu0 %v233, 80
    %v442 = vpop.permute.xlu0 %441
    %v443 = vsel %vm241, %v436, 0
    %v445 = vsel %vm241, %v438, 0
    %v447 = vsel %vm241, %v440, 0
    %v449 = vsel %vm241, %v442, 0
    %451 = vmatpush.xpose.msra.mxu0 0.0
    %452 = vmatpush.xpose.msra.mxu0 0.0
    %453 = vmatpush.xpose.msra.mxu0 0.0
    %454 = vmatpush.xpose.msra.mxu0 0.0
    %455 = vmatpush.xpose.msra.mxu0 0.0
    %456 = vmatpush.xpose.msra.mxu0 0.0
    %457 = vmatpush.xpose.msra.mxu0 0.0
    %458 = vmatpush.xpose.msra.mxu0 0.0
    %459 = vmatpush.xpose.msra.mxu0 0.0
    %460 = vmatpush.xpose.msra.mxu0 0.0
    %461 = vmatpush.xpose.msra.mxu0 0.0
    %462 = vmatpush.xpose.msra.mxu0 0.0
    %463 = vmatpush.xpose.msra.mxu0 0.0
    %464 = vmatpush.xpose.msra.mxu0 0.0
    %465 = vmatpush.xpose.msra.mxu0 %v449
    %466 = vmatpush.xpose.msra.mxu0 %v447
    %467 = vmatmul.f32.gmra.mxu0 %v443
    %v468 = vpop.f32.mrf.mxu0
    %v469 = vadd.f32 0.0, %v468
    %470 = vmatmul.f32.gmra.mxu0 %v445
    %v471 = vpop.f32.mrf.mxu0
    %v472 = vadd.f32 0.0, %v471
    %473 = vdwg.mxu0
    %v474 = vmul.f32 %v469, 0.35355338
    %v475 = vmul.f32 %v472, 0.35355338
    %v476 = vadd.f32 %v474, %v196
    %v477 = vadd.f32 %v475, %v197
    %v478 = vsel %vm277, %v476, -inf
    %479 = vmax.xlane.f32.xlu0 %v478
    %v480 = vpop.xlane.xlu0 %479
    %v481 = vsel %vm277, %v477, -inf
    %482 = vmax.xlane.f32.xlu0 %v481
    %v483 = vpop.xlane.xlu0 %482
    %v484 = vsub.f32 %v476, %v480
    %v485 = vsub.f32 %v477, %v483
    %v486 = vmul.f32 %v484, 1.442695
    %v487 = vpow.pop %v486
    %v488 = vmul.f32 %v485, 1.442695
    %v489 = vpow.pop %v488
    %v490 = vsel %vm277, %v487, 0.0
    %491 = vadd.xlane.f32.xlu0 %v490
    %v492 = vpop.xlane.xlu0 %491
    %v493 = vsel %vm277, %v489, 0.0
    %494 = vadd.xlane.f32.xlu0 %v493
    %v495 = vpop.xlane.xlu0 %494
    %v496 = vrcp.pop %v492
    %v497 = vrcp.pop %v495
    %v498 = vmul.f32 %v487, %v496
    %v499 = vmul.f32 %v489, %v497
    %500 = vrot.lane.b32.xlu0 %v230, 48
    %v501 = vpop.permute.xlu0 %500
    %502 = vrot.lane.b32.xlu0 %v233, 48
    %v503 = vpop.permute.xlu0 %502
    %v507 = vsel %vm277, %v498, 0
    %v510 = vsel %vm277, %v499, 0
    %512 = vmatpush.msra.mxu0 0.0
    %513 = vmatpush.msra.mxu0 0.0
    %514 = vmatpush.msra.mxu0 0.0
    %515 = vmatpush.msra.mxu0 0.0
    %516 = vmatpush.msra.mxu0 0.0
    %517 = vmatpush.msra.mxu0 0.0
    %518 = vmatpush.msra.mxu0 0.0
    %519 = vmatpush.msra.mxu0 0.0
    %520 = vmatpush.msra.mxu0 0.0
    %521 = vmatpush.msra.mxu0 0.0
    %522 = vmatpush.msra.mxu0 0.0
    %523 = vmatpush.msra.mxu0 0.0
    %524 = vmatpush.msra.mxu0 0.0
    %525 = vmatpush.msra.mxu0 0.0
    %526 = vmatpush.msra.mxu0 %v503
    %527 = vmatpush.msra.mxu0 %v501
    %528 = vmatmul.f32.gmra.mxu0 %v507
    %v529 = vpop.f32.mrf.mxu0
    %v530 = vadd.f32 0.0, %v529
    %531 = vmatmul.f32.gmra.mxu0 %v510
    %v532 = vpop.f32.mrf.mxu0
    %v533 = vadd.f32 0.0, %v532
    %534 = vdwg.mxu0
    %535 = vrot.lane.b32.xlu0 %v230, 104
    %v536 = vpop.permute.xlu0 %535
    %537 = vrot.lane.b32.xlu0 %v233, 104
    %v538 = vpop.permute.xlu0 %537
    %539 = vrot.lane.b32.xlu0 %v230, 72
    %v540 = vpop.permute.xlu0 %539
    %541 = vrot.lane.b32.xlu0 %v233, 72
    %v542 = vpop.permute.xlu0 %541
    %v543 = vsel %vm241, %v536, 0
    %v545 = vsel %vm241, %v538, 0
    %v547 = vsel %vm241, %v540, 0
    %v549 = vsel %vm241, %v542, 0
    %551 = vmatpush.xpose.msra.mxu0 0.0
    %552 = vmatpush.xpose.msra.mxu0 0.0
    %553 = vmatpush.xpose.msra.mxu0 0.0
    %554 = vmatpush.xpose.msra.mxu0 0.0
    %555 = vmatpush.xpose.msra.mxu0 0.0
    %556 = vmatpush.xpose.msra.mxu0 0.0
    %557 = vmatpush.xpose.msra.mxu0 0.0
    %558 = vmatpush.xpose.msra.mxu0 0.0
    %559 = vmatpush.xpose.msra.mxu0 0.0
    %560 = vmatpush.xpose.msra.mxu0 0.0
    %561 = vmatpush.xpose.msra.mxu0 0.0
    %562 = vmatpush.xpose.msra.mxu0 0.0
    %563 = vmatpush.xpose.msra.mxu0 0.0
    %564 = vmatpush.xpose.msra.mxu0 0.0
    %565 = vmatpush.xpose.msra.mxu0 %v549
    %566 = vmatpush.xpose.msra.mxu0 %v547
    %567 = vmatmul.f32.gmra.mxu0 %v543
    %v568 = vpop.f32.mrf.mxu0
    %v569 = vadd.f32 0.0, %v568
    %570 = vmatmul.f32.gmra.mxu0 %v545
    %v571 = vpop.f32.mrf.mxu0
    %v572 = vadd.f32 0.0, %v571
    %573 = vdwg.mxu0
    %v574 = vmul.f32 %v569, 0.35355338
    %v575 = vmul.f32 %v572, 0.35355338
    %v576 = vadd.f32 %v574, %v196
    %v577 = vadd.f32 %v575, %v197
    %v578 = vsel %vm277, %v576, -inf
    %579 = vmax.xlane.f32.xlu0 %v578
    %v580 = vpop.xlane.xlu0 %579
    %v581 = vsel %vm277, %v577, -inf
    %582 = vmax.xlane.f32.xlu0 %v581
    %v583 = vpop.xlane.xlu0 %582
    %v584 = vsub.f32 %v576, %v580
    %v585 = vsub.f32 %v577, %v583
    %v586 = vmul.f32 %v584, 1.442695
    %v587 = vpow.pop %v586
    %v588 = vmul.f32 %v585, 1.442695
    %v589 = vpow.pop %v588
    %v590 = vsel %vm277, %v587, 0.0
    %591 = vadd.xlane.f32.xlu0 %v590
    %v592 = vpop.xlane.xlu0 %591
    %v593 = vsel %vm277, %v589, 0.0
    %594 = vadd.xlane.f32.xlu0 %v593
    %v595 = vpop.xlane.xlu0 %594
    %v596 = vrcp.pop %v592
    %v597 = vrcp.pop %v595
    %v598 = vmul.f32 %v587, %v596
    %v599 = vmul.f32 %v589, %v597
    %600 = vrot.lane.b32.xlu0 %v230, 40
    %v601 = vpop.permute.xlu0 %600
    %602 = vrot.lane.b32.xlu0 %v233, 40
    %v603 = vpop.permute.xlu0 %602
    %v607 = vsel %vm277, %v598, 0
    %v610 = vsel %vm277, %v599, 0
    %612 = vmatpush.msra.mxu0 0.0
    %613 = vmatpush.msra.mxu0 0.0
    %614 = vmatpush.msra.mxu0 0.0
    %615 = vmatpush.msra.mxu0 0.0
    %616 = vmatpush.msra.mxu0 0.0
    %617 = vmatpush.msra.mxu0 0.0
    %618 = vmatpush.msra.mxu0 0.0
    %619 = vmatpush.msra.mxu0 0.0
    %620 = vmatpush.msra.mxu0 0.0
    %621 = vmatpush.msra.mxu0 0.0
    %622 = vmatpush.msra.mxu0 0.0
    %623 = vmatpush.msra.mxu0 0.0
    %624 = vmatpush.msra.mxu0 0.0
    %625 = vmatpush.msra.mxu0 0.0
    %626 = vmatpush.msra.mxu0 %v603
    %627 = vmatpush.msra.mxu0 %v601
    %628 = vmatmul.f32.gmra.mxu0 %v607
    %v629 = vpop.f32.mrf.mxu0
    %v630 = vadd.f32 0.0, %v629
    %631 = vmatmul.f32.gmra.mxu0 %v610
    %v632 = vpop.f32.mrf.mxu0
    %v633 = vadd.f32 0.0, %v632
    %634 = vdwg.mxu0
    %635 = vrot.lane.b32.xlu0 %v398, 16
    %v636 = vpop.permute.xlu0 %635
    %637 = vrot.lane.b32.xlu0 %v399, 16
    %v638 = vpop.permute.xlu0 %637
    %641 = vrot.lane.b32.xlu0 %v498, 32
    %v642 = vpop.permute.xlu0 %641
    %643 = vrot.lane.b32.xlu0 %v499, 32
    %v644 = vpop.permute.xlu0 %643
    %647 = vrot.lane.b32.xlu0 %v598, 48
    %v648 = vpop.permute.xlu0 %647
    %649 = vrot.lane.b32.xlu0 %v599, 48
    %v650 = vpop.permute.xlu0 %649
    %v653 = vsel %vm277, %v298, %v636
    %v654 = vsel %vm277, %v299, %v638
    %v655 = vsel %vm114, %v653, %v642
    %v656 = vsel %vm114, %v654, %v644
    %vm657 = vcmask 392192
    %v658 = vsel %vm657, %v655, %v648
    %v659 = vsel %vm657, %v656, %v650
    %vm660 = vcmask 523264
    %661 = vst.msk [vmem:[%s23] sm:$0xff] %vm660, %v658
    %662 = vst.msk [vmem:[%s23 + $0x8] sm:$0xff] %vm660, %v659
    %665 = vrot.lane.b32.xlu0 %v430, 8
    %v666 = vpop.permute.xlu0 %665
    %667 = vrot.lane.b32.xlu0 %v433, 8
    %v668 = vpop.permute.xlu0 %667
    %673 = vrot.lane.b32.xlu0 %v530, 16
    %v674 = vpop.permute.xlu0 %673
    %675 = vrot.lane.b32.xlu0 %v533, 16
    %v676 = vpop.permute.xlu0 %675
    %681 = vrot.lane.b32.xlu0 %v630, 24
    %v682 = vpop.permute.xlu0 %681
    %683 = vrot.lane.b32.xlu0 %v633, 24
    %v684 = vpop.permute.xlu0 %683
    %v687 = vsel %vm241, %v330, %v666
    %v688 = vsel %vm241, %v333, %v668
    %v689 = vsel %vm277, %v687, %v674
    %v690 = vsel %vm277, %v688, %v676
    %vm691 = vcmask 195584
    %v692 = vsel %vm691, %v689, %v682
    %v693 = vsel %vm691, %v690, %v684
    %v694 = vld [vmem:[%s11] sm:$0xff]
    %v695 = vld [vmem:[%s11 + $0x8] sm:$0xff]
    %v696 = vld [vmem:[%s11 + $0x10] sm:$0xff]
    %v697 = vld [vmem:[%s11 + $0x18] sm:$0xff]
    %v698 = vld [vmem:[%s12] sm:$0x1]
    %v700 = vperm.slane %v698, 0
    %v703 = vsel %vm114, %v692, 0
    %v706 = vsel %vm114, %v693, 0
    %708 = vmatpush.msra.mxu0 0.0
    %709 = vmatpush.msra.mxu0 0.0
    %710 = vmatpush.msra.mxu0 0.0
    %711 = vmatpush.msra.mxu0 0.0
    %712 = vmatpush.msra.mxu0 0.0
    %713 = vmatpush.msra.mxu0 0.0
    %714 = vmatpush.msra.mxu0 0.0
    %715 = vmatpush.msra.mxu0 0.0
    %716 = vmatpush.msra.mxu0 0.0
    %717 = vmatpush.msra.mxu0 0.0
    %718 = vmatpush.msra.mxu0 0.0
    %719 = vmatpush.msra.mxu0 0.0
    %720 = vmatpush.msra.mxu0 %v697
    %721 = vmatpush.msra.mxu0 %v696
    %722 = vmatpush.msra.mxu0 %v695
    %723 = vmatpush.msra.mxu0 %v694
    %724 = vmatmul.f32.gmra.mxu0 %v703
    %v725 = vpop.f32.mrf.mxu0
    %v726 = vadd.f32 %v700, %v725
    %727 = vmatmul.f32.gmra.mxu0 %v706
    %v728 = vpop.f32.mrf.mxu0
    %v729 = vadd.f32 %v700, %v728
    %730 = vdwg.mxu0
    %v731 = vadd.f32 %v174, %v726
    %v732 = vadd.f32 %v175, %v729
    %v733 = vld [vmem:[%s13] sm:$0x1]
    %v734 = vld [vmem:[%s14] sm:$0x1]
    %v735 = vsel %vm114, %v731, 0.0
    %736 = vadd.xlane.f32.xlu0 %v735
    %v737 = vpop.xlane.xlu0 %736
    %v738 = vsel %vm114, %v732, 0.0
    %739 = vadd.xlane.f32.xlu0 %v738
    %v740 = vpop.xlane.xlu0 %739
    %v741 = vmul.f32 %v737, %v127
    %v742 = vmul.f32 %v740, %v127
    %v743 = vsub.f32 %v731, %v741
    %v744 = vsub.f32 %v732, %v742
    %v745 = vmul.f32 %v743, %v743
    %v746 = vmul.f32 %v744, %v744
    %v747 = vsel %vm114, %v745, 0.0
    %748 = vadd.xlane.f32.xlu0 %v747
    %v749 = vpop.xlane.xlu0 %748
    %v750 = vsel %vm114, %v746, 0.0
    %751 = vadd.xlane.f32.xlu0 %v750
    %v752 = vpop.xlane.xlu0 %751
    %v753 = vmul.f32 %v749, %v127
    %v754 = vmul.f32 %v752, %v127
    %v755 = vadd.f32 %v753, 1e-12
    %v756 = vadd.f32 %v754, 1e-12
    %v757 = vrsqrt.pop %v755
    %v758 = vmul.f32 %v757, %v755
    %v759 = vmul.f32 %v758, %v757
    %v760 = vmul.f32 0.5, %v759
    %v761 = vsub.f32 1.5, %v760
    %v762 = vmul.f32 %v757, %v761
    %vm763 = vweird.f32 %v755
    %vm764 = vweird.f32 %v757
    %vm765 = vmor %vm763, %vm764
    %v766 = vsel %vm765, %v757, %v762
    %v767 = vrsqrt.pop %v756
    %v768 = vmul.f32 %v767, %v756
    %v769 = vmul.f32 %v768, %v767
    %v770 = vmul.f32 0.5, %v769
    %v771 = vsub.f32 1.5, %v770
    %v772 = vmul.f32 %v767, %v771
    %vm773 = vweird.f32 %v756
    %vm774 = vweird.f32 %v767
    %vm775 = vmor %vm773, %vm774
    %v776 = vsel %vm775, %v767, %v772
    %v777 = vmul.f32 %v743, %v766
    %v778 = vmul.f32 %v744, %v776
    %v780 = vperm.slane %v733, 0
    %v782 = vmul.f32 %v780, %v777
    %v783 = vmul.f32 %v780, %v778
    %v785 = vperm.slane %v734, 0
    %v787 = vadd.f32 %v782, %v785
    %v788 = vadd.f32 %v783, %v785
    %v789 = vld [vmem:[%s15] sm:$0xff]
    %v790 = vld [vmem:[%s15 + $0x8] sm:$0xff]
    %v791 = vld [vmem:[%s15 + $0x10] sm:$0xff]
    %v792 = vld [vmem:[%s15 + $0x18] sm:$0xff]
    %v793 = vld [vmem:[%s16] sm:$0x1]
    %v795 = vperm.slane %v793, 0
    %v798 = vsel %vm114, %v787, 0
    %v801 = vsel %vm114, %v788, 0
    %803 = vmatpush.msra.mxu0 0.0
    %804 = vmatpush.msra.mxu0 0.0
    %805 = vmatpush.msra.mxu0 0.0
    %806 = vmatpush.msra.mxu0 0.0
    %807 = vmatpush.msra.mxu0 0.0
    %808 = vmatpush.msra.mxu0 0.0
    %809 = vmatpush.msra.mxu0 0.0
    %810 = vmatpush.msra.mxu0 0.0
    %811 = vmatpush.msra.mxu0 0.0
    %812 = vmatpush.msra.mxu0 0.0
    %813 = vmatpush.msra.mxu0 0.0
    %814 = vmatpush.msra.mxu0 0.0
    %815 = vmatpush.msra.mxu0 %v792
    %816 = vmatpush.msra.mxu0 %v791
    %817 = vmatpush.msra.mxu0 %v790
    %818 = vmatpush.msra.mxu0 %v789
    %819 = vmatmul.f32.gmra.mxu0 %v798
    %v820 = vpop.f32.mrf.mxu0
    %v821 = vadd.f32 %v795, %v820
    %822 = vmatmul.f32.gmra.mxu0 %v801
    %v823 = vpop.f32.mrf.mxu0
    %v824 = vadd.f32 %v795, %v823
    %825 = vdwg.mxu0
    %v826 = vmul.f32 %v821, 0.5
    %v827 = vmul.f32 %v824, 0.5
    %v828 = vrcp.pop 1.4142135
    %v829 = vmul.f32 1.4142135, %v828
    %v830 = vsub.f32 1.0, %v829
    %v831 = vmul.f32 %v828, %v830
    %v832 = vadd.f32 %v828, %v831
    %vm833 = vweird.f32 %v828
    %v834 = vsel %vm833, %v828, %v832
    %v835 = vmul.f32 %v821, %v834
    %v836 = vmul.f32 %v824, %v834
    %v837 = vmul.f32 %v835, %v835
    %v838 = vmin.f32 16.0, %v837
    %v839 = vmul.f32 %v838, 2.1237322e-06
    %v840 = vadd.f32 %v839, 0.00028619796
    %v841 = vmul.f32 %v838, %v840
    %v842 = vadd.f32 %v841, 0.0036580483
    %v843 = vmul.f32 %v838, %v842
    %v844 = vadd.f32 %v843, 0.05243302
    %v845 = vmul.f32 %v838, %v844
    %v846 = vadd.f32 %v845, 0.18741608
    %v847 = vmul.f32 %v838, %v846
    %v848 = vadd.f32 %v847, 1.1283791
    %v849 = vmul.f32 %v835, %v848
    %v850 = vmul.f32 %v838, 3.8918573e-05
    %v851 = vadd.f32 %v850, 0.001143296
    %v852 = vmul.f32 %v838, %v851
    %v853 = vadd.f32 %v852, 0.014752088
    %v854 = vmul.f32 %v838, %v853
    %v855 = vadd.f32 %v854, 0.112945676
    %v856 = vmul.f32 %v838, %v855
    %v857 = vadd.f32 %v856, 0.4994258
    %v858 = vmul.f32 %v838, %v857
    %v859 = vadd.f32 %v858, 1.0
    %v860 = vrcp.pop %v859
    %v861 = vmul.f32 %v859, %v860
    %v862 = vsub.f32 1.0, %v861
    %v863 = vmul.f32 %v860, %v862
    %v864 = vadd.f32 %v860, %v863
    %vm865 = vweird.f32 %v859
    %vm866 = vweird.f32 %v860
    %vm867 = vmor %vm865, %vm866
    %v868 = vsel %vm867, %v860, %v864
    %v869 = vand.u32 2147483647, %v859
    %vm870 = vcmp.eq.f32.partialorder %v869, 8.507059e+37
    %v871 = vand.u32 %v859, 2147483648
    %v872 = vor.u32 1.1754944e-38, %v871
    %v873 = vsel %vm870, %v872, %v868
    %v874 = vmul.f32 %v849, %v873
    %v875 = vmin.f32 %v874, 1.0
    %v876 = vmax.f32 %v875, -1.0
    %v877 = vmul.f32 %v836, %v836
    %v878 = vmin.f32 16.0, %v877
    %v879 = vmul.f32 %v878, 2.1237322e-06
    %v880 = vadd.f32 %v879, 0.00028619796
    %v881 = vmul.f32 %v878, %v880
    %v882 = vadd.f32 %v881, 0.0036580483
    %v883 = vmul.f32 %v878, %v882
    %v884 = vadd.f32 %v883, 0.05243302
    %v885 = vmul.f32 %v878, %v884
    %v886 = vadd.f32 %v885, 0.18741608
    %v887 = vmul.f32 %v878, %v886
    %v888 = vadd.f32 %v887, 1.1283791
    %v889 = vmul.f32 %v836, %v888
    %v890 = vmul.f32 %v878, 3.8918573e-05
    %v891 = vadd.f32 %v890, 0.001143296
    %v892 = vmul.f32 %v878, %v891
    %v893 = vadd.f32 %v892, 0.014752088
    %v894 = vmul.f32 %v878, %v893
    %v895 = vadd.f32 %v894, 0.112945676
    %v896 = vmul.f32 %v878, %v895
    %v897 = vadd.f32 %v896, 0.4994258
    %v898 = vmul.f32 %v878, %v897
    %v899 = vadd.f32 %v898, 1.0
    %v900 = vrcp.pop %v899
    %v901 = vmul.f32 %v899, %v900
    %v902 = vsub.f32 1.0, %v901
    %v903 = vmul.f32 %v900, %v902
    %v904 = vadd.f32 %v900, %v903
    %vm905 = vweird.f32 %v899
    %vm906 = vweird.f32 %v900
    %vm907 = vmor %vm905, %vm906
    %v908 = vsel %vm907, %v900, %v904
    %v909 = vand.u32 2147483647, %v899
    %vm910 = vcmp.eq.f32.partialorder %v909, 8.507059e+37
    %v911 = vand.u32 %v899, 2147483648
    %v912 = vor.u32 1.1754944e-38, %v911
    %v913 = vsel %vm910, %v912, %v908
    %v914 = vmul.f32 %v889, %v913
    %v915 = vmin.f32 %v914, 1.0
    %v916 = vmax.f32 %v915, -1.0
    %v917 = vadd.f32 %v876, 1.0
    %v918 = vadd.f32 %v916, 1.0
    %v919 = vmul.f32 %v826, %v917
    %v920 = vmul.f32 %v827, %v918
    %v921 = vld [vmem:[%s17] sm:$0xff]
    %v922 = vld [vmem:[%s17 + $0x8] sm:$0xff]
    %v923 = vld [vmem:[%s17 + $0x10] sm:$0xff]
    %v924 = vld [vmem:[%s17 + $0x18] sm:$0xff]
    %v925 = vld [vmem:[%s17 + $0x20] sm:$0xff]
    %v926 = vld [vmem:[%s17 + $0x28] sm:$0xff]
    %v927 = vld [vmem:[%s17 + $0x30] sm:$0xff]
    %v928 = vld [vmem:[%s17 + $0x38] sm:$0xff]
    %v929 = vld [vmem:[%s18] sm:$0x1]
    %v931 = vperm.slane %v929, 0
    %v934 = vsel %vm660, %v919, 0
    %v937 = vsel %vm660, %v920, 0
    %939 = vmatpush.msra.mxu0 0.0
    %940 = vmatpush.msra.mxu0 0.0
    %941 = vmatpush.msra.mxu0 0.0
    %942 = vmatpush.msra.mxu0 0.0
    %943 = vmatpush.msra.mxu0 0.0
    %944 = vmatpush.msra.mxu0 0.0
    %945 = vmatpush.msra.mxu0 0.0
    %946 = vmatpush.msra.mxu0 0.0
    %947 = vmatpush.msra.mxu0 %v928
    %948 = vmatpush.msra.mxu0 %v927
    %949 = vmatpush.msra.mxu0 %v926
    %950 = vmatpush.msra.mxu0 %v925
    %951 = vmatpush.msra.mxu0 %v924
    %952 = vmatpush.msra.mxu0 %v923
    %953 = vmatpush.msra.mxu0 %v922
    %954 = vmatpush.msra.mxu0 %v921
    %955 = vmatmul.f32.gmra.mxu0 %v934
    %v956 = vpop.f32.mrf.mxu0
    %v957 = vadd.f32 %v931, %v956
    %958 = vmatmul.f32.gmra.mxu0 %v937
    %v959 = vpop.f32.mrf.mxu0
    %v960 = vadd.f32 %v931, %v959
    %961 = vdwg.mxu0
    %v962 = vadd.f32 %v787, %v957
    %v963 = vadd.f32 %v788, %v960
    %v964 = vld [vmem:[%s19] sm:$0x1]
    %v965 = vld [vmem:[%s20] sm:$0x1]
    %v966 = vsel %vm114, %v962, 0.0
    %967 = vadd.xlane.f32.xlu0 %v966
    %v968 = vpop.xlane.xlu0 %967
    %v969 = vsel %vm114, %v963, 0.0
    %970 = vadd.xlane.f32.xlu0 %v969
    %v971 = vpop.xlane.xlu0 %970
    %v972 = vmul.f32 %v968, %v127
    %v973 = vmul.f32 %v971, %v127
    %v974 = vsub.f32 %v962, %v972
    %v975 = vsub.f32 %v963, %v973
    %v976 = vmul.f32 %v974, %v974
    %v977 = vmul.f32 %v975, %v975
    %v978 = vsel %vm114, %v976, 0.0
    %979 = vadd.xlane.f32.xlu0 %v978
    %v980 = vpop.xlane.xlu0 %979
    %v981 = vsel %vm114, %v977, 0.0
    %982 = vadd.xlane.f32.xlu0 %v981
    %v983 = vpop.xlane.xlu0 %982
    %v984 = vmul.f32 %v980, %v127
    %v985 = vmul.f32 %v983, %v127
    %v986 = vadd.f32 %v984, 1e-12
    %v987 = vadd.f32 %v985, 1e-12
    %v988 = vrsqrt.pop %v986
    %v989 = vmul.f32 %v988, %v986
    %v990 = vmul.f32 %v989, %v988
    %v991 = vmul.f32 0.5, %v990
    %v992 = vsub.f32 1.5, %v991
    %v993 = vmul.f32 %v988, %v992
    %vm994 = vweird.f32 %v986
    %vm995 = vweird.f32 %v988
    %vm996 = vmor %vm994, %vm995
    %v997 = vsel %vm996, %v988, %v993
    %v998 = vrsqrt.pop %v987
    %v999 = vmul.f32 %v998, %v987
    %v1000 = vmul.f32 %v999, %v998
    %v1001 = vmul.f32 0.5, %v1000
    %v1002 = vsub.f32 1.5, %v1001
    %v1003 = vmul.f32 %v998, %v1002
    %vm1004 = vweird.f32 %v987
    %vm1005 = vweird.f32 %v998
    %vm1006 = vmor %vm1004, %vm1005
    %v1007 = vsel %vm1006, %v998, %v1003
    %v1008 = vmul.f32 %v974, %v997
    %v1009 = vmul.f32 %v975, %v1007
    %v1011 = vperm.slane %v964, 0
    %v1013 = vmul.f32 %v1011, %v1008
    %v1014 = vmul.f32 %v1011, %v1009
    %v1016 = vperm.slane %v965, 0
    %v1018 = vadd.f32 %v1013, %v1016
    %v1019 = vadd.f32 %v1014, %v1016
    %s1020 = scalar_lea.vmem %s9, 32
    %v1021 = vld [vmem:[%s1020] sm:$0xff]
    %v1022 = vld [vmem:[%s1020 + $0x8] sm:$0xff]
    %v1023 = vld [vmem:[%s1020 + $0x10] sm:$0xff]
    %v1024 = vld [vmem:[%s1020 + $0x18] sm:$0xff]
    %s1025 = scalar_lea.vmem %s10, 1
    %v1026 = vld [vmem:[%s1025] sm:$0x1]
    %v1028 = vperm.slane %v1026, 0
    %v1031 = vsel %vm114, %v1018, 0
    %v1034 = vsel %vm114, %v1019, 0
    %1036 = vmatpush.msra.mxu0 0.0
    %1037 = vmatpush.msra.mxu0 0.0
    %1038 = vmatpush.msra.mxu0 0.0
    %1039 = vmatpush.msra.mxu0 0.0
    %1040 = vmatpush.msra.mxu0 0.0
    %1041 = vmatpush.msra.mxu0 0.0
    %1042 = vmatpush.msra.mxu0 0.0
    %1043 = vmatpush.msra.mxu0 0.0
    %1044 = vmatpush.msra.mxu0 0.0
    %1045 = vmatpush.msra.mxu0 0.0
    %1046 = vmatpush.msra.mxu0 0.0
    %1047 = vmatpush.msra.mxu0 0.0
    %1048 = vmatpush.msra.mxu0 %v1024
    %1049 = vmatpush.msra.mxu0 %v1023
    %1050 = vmatpush.msra.mxu0 %v1022
    %1051 = vmatpush.msra.mxu0 %v1021
    %1052 = vmatmul.f32.gmra.mxu0 %v1031
    %v1053 = vpop.f32.mrf.mxu0
    %v1054 = vadd.f32 %v1028, %v1053
    %1055 = vmatmul.f32.gmra.mxu0 %v1034
    %v1056 = vpop.f32.mrf.mxu0
    %v1057 = vadd.f32 %v1028, %v1056
    %1058 = vdwg.mxu0
    %1061 = vrot.lane.b32.xlu0 %v1054, 96
    %v1062 = vpop.permute.xlu0 %1061
    %1063 = vrot.lane.b32.xlu0 %v1057, 96
    %v1064 = vpop.permute.xlu0 %1063
    %v1065 = vsel %vm241, %v1054, 0
    %v1067 = vsel %vm241, %v1057, 0
    %v1069 = vsel %vm241, %v1062, 0
    %v1071 = vsel %vm241, %v1064, 0
    %1073 = vmatpush.xpose.msra.mxu0 0.0
    %1074 = vmatpush.xpose.msra.mxu0 0.0
    %1075 = vmatpush.xpose.msra.mxu0 0.0
    %1076 = vmatpush.xpose.msra.mxu0 0.0
    %1077 = vmatpush.xpose.msra.mxu0 0.0
    %1078 = vmatpush.xpose.msra.mxu0 0.0
    %1079 = vmatpush.xpose.msra.mxu0 0.0
    %1080 = vmatpush.xpose.msra.mxu0 0.0
    %1081 = vmatpush.xpose.msra.mxu0 0.0
    %1082 = vmatpush.xpose.msra.mxu0 0.0
    %1083 = vmatpush.xpose.msra.mxu0 0.0
    %1084 = vmatpush.xpose.msra.mxu0 0.0
    %1085 = vmatpush.xpose.msra.mxu0 0.0
    %1086 = vmatpush.xpose.msra.mxu0 0.0
    %1087 = vmatpush.xpose.msra.mxu0 %v1071
    %1088 = vmatpush.xpose.msra.mxu0 %v1069
    %1089 = vmatmul.f32.gmra.mxu0 %v1065
    %v1090 = vpop.f32.mrf.mxu0
    %v1091 = vadd.f32 0.0, %v1090
    %1092 = vmatmul.f32.gmra.mxu0 %v1067
    %v1093 = vpop.f32.mrf.mxu0
    %v1094 = vadd.f32 0.0, %v1093
    %1095 = vdwg.mxu0
    %v1096 = vmul.f32 %v1091, 0.35355338
    %v1097 = vmul.f32 %v1094, 0.35355338
    %v1098 = vadd.f32 %v1096, %v196
    %v1099 = vadd.f32 %v1097, %v197
    %v1100 = vsel %vm277, %v1098, -inf
    %1101 = vmax.xlane.f32.xlu0 %v1100
    %v1102 = vpop.xlane.xlu0 %1101
    %v1103 = vsel %vm277, %v1099, -inf
    %1104 = vmax.xlane.f32.xlu0 %v1103
    %v1105 = vpop.xlane.xlu0 %1104
    %v1106 = vsub.f32 %v1098, %v1102
    %v1107 = vsub.f32 %v1099, %v1105
    %v1108 = vmul.f32 %v1106, 1.442695
    %v1109 = vpow.pop %v1108
    %v1110 = vmul.f32 %v1107, 1.442695
    %v1111 = vpow.pop %v1110
    %v1112 = vsel %vm277, %v1109, 0.0
    %1113 = vadd.xlane.f32.xlu0 %v1112
    %v1114 = vpop.xlane.xlu0 %1113
    %v1115 = vsel %vm277, %v1111, 0.0
    %1116 = vadd.xlane.f32.xlu0 %v1115
    %v1117 = vpop.xlane.xlu0 %1116
    %v1118 = vrcp.pop %v1114
    %v1119 = vrcp.pop %v1117
    %v1120 = vmul.f32 %v1109, %v1118
    %v1121 = vmul.f32 %v1111, %v1119
    %1122 = vrot.lane.b32.xlu0 %v1054, 64
    %v1123 = vpop.permute.xlu0 %1122
    %1124 = vrot.lane.b32.xlu0 %v1057, 64
    %v1125 = vpop.permute.xlu0 %1124
    %v1129 = vsel %vm277, %v1120, 0
    %v1132 = vsel %vm277, %v1121, 0
    %1134 = vmatpush.msra.mxu0 0.0
    %1135 = vmatpush.msra.mxu0 0.0
    %1136 = vmatpush.msra.mxu0 0.0
    %1137 = vmatpush.msra.mxu0 0.0
    %1138 = vmatpush.msra.mxu0 0.0
    %1139 = vmatpush.msra.mxu0 0.0
    %1140 = vmatpush.msra.mxu0 0.0
    %1141 = vmatpush.msra.mxu0 0.0
    %1142 = vmatpush.msra.mxu0 0.0
    %1143 = vmatpush.msra.mxu0 0.0
    %1144 = vmatpush.msra.mxu0 0.0
    %1145 = vmatpush.msra.mxu0 0.0
    %1146 = vmatpush.msra.mxu0 0.0
    %1147 = vmatpush.msra.mxu0 0.0
    %1148 = vmatpush.msra.mxu0 %v1125
    %1149 = vmatpush.msra.mxu0 %v1123
    %1150 = vmatmul.f32.gmra.mxu0 %v1129
    %v1151 = vpop.f32.mrf.mxu0
    %v1152 = vadd.f32 0.0, %v1151
    %1153 = vmatmul.f32.gmra.mxu0 %v1132
    %v1154 = vpop.f32.mrf.mxu0
    %v1155 = vadd.f32 0.0, %v1154
    %1156 = vdwg.mxu0
    %1157 = vrot.lane.b32.xlu0 %v1054, 120
    %v1158 = vpop.permute.xlu0 %1157
    %1159 = vrot.lane.b32.xlu0 %v1057, 120
    %v1160 = vpop.permute.xlu0 %1159
    %1161 = vrot.lane.b32.xlu0 %v1054, 88
    %v1162 = vpop.permute.xlu0 %1161
    %1163 = vrot.lane.b32.xlu0 %v1057, 88
    %v1164 = vpop.permute.xlu0 %1163
    %v1165 = vsel %vm241, %v1158, 0
    %v1167 = vsel %vm241, %v1160, 0
    %v1169 = vsel %vm241, %v1162, 0
    %v1171 = vsel %vm241, %v1164, 0
    %1173 = vmatpush.xpose.msra.mxu0 0.0
    %1174 = vmatpush.xpose.msra.mxu0 0.0
    %1175 = vmatpush.xpose.msra.mxu0 0.0
    %1176 = vmatpush.xpose.msra.mxu0 0.0
    %1177 = vmatpush.xpose.msra.mxu0 0.0
    %1178 = vmatpush.xpose.msra.mxu0 0.0
    %1179 = vmatpush.xpose.msra.mxu0 0.0
    %1180 = vmatpush.xpose.msra.mxu0 0.0
    %1181 = vmatpush.xpose.msra.mxu0 0.0
    %1182 = vmatpush.xpose.msra.mxu0 0.0
    %1183 = vmatpush.xpose.msra.mxu0 0.0
    %1184 = vmatpush.xpose.msra.mxu0 0.0
    %1185 = vmatpush.xpose.msra.mxu0 0.0
    %1186 = vmatpush.xpose.msra.mxu0 0.0
    %1187 = vmatpush.xpose.msra.mxu0 %v1171
    %1188 = vmatpush.xpose.msra.mxu0 %v1169
    %1189 = vmatmul.f32.gmra.mxu0 %v1165
    %v1190 = vpop.f32.mrf.mxu0
    %v1191 = vadd.f32 0.0, %v1190
    %1192 = vmatmul.f32.gmra.mxu0 %v1167
    %v1193 = vpop.f32.mrf.mxu0
    %v1194 = vadd.f32 0.0, %v1193
    %1195 = vdwg.mxu0
    %v1196 = vmul.f32 %v1191, 0.35355338
    %v1197 = vmul.f32 %v1194, 0.35355338
    %v1198 = vadd.f32 %v1196, %v196
    %v1199 = vadd.f32 %v1197, %v197
    %v1200 = vsel %vm277, %v1198, -inf
    %1201 = vmax.xlane.f32.xlu0 %v1200
    %v1202 = vpop.xlane.xlu0 %1201
    %v1203 = vsel %vm277, %v1199, -inf
    %1204 = vmax.xlane.f32.xlu0 %v1203
    %v1205 = vpop.xlane.xlu0 %1204
    %v1206 = vsub.f32 %v1198, %v1202
    %v1207 = vsub.f32 %v1199, %v1205
    %v1208 = vmul.f32 %v1206, 1.442695
    %v1209 = vpow.pop %v1208
    %v1210 = vmul.f32 %v1207, 1.442695
    %v1211 = vpow.pop %v1210
    %v1212 = vsel %vm277, %v1209, 0.0
    %1213 = vadd.xlane.f32.xlu0 %v1212
    %v1214 = vpop.xlane.xlu0 %1213
    %v1215 = vsel %vm277, %v1211, 0.0
    %1216 = vadd.xlane.f32.xlu0 %v1215
    %v1217 = vpop.xlane.xlu0 %1216
    %v1218 = vrcp.pop %v1214
    %v1219 = vrcp.pop %v1217
    %v1220 = vmul.f32 %v1209, %v1218
    %v1221 = vmul.f32 %v1211, %v1219
    %1222 = vrot.lane.b32.xlu0 %v1054, 56
    %v1223 = vpop.permute.xlu0 %1222
    %1224 = vrot.lane.b32.xlu0 %v1057, 56
    %v1225 = vpop.permute.xlu0 %1224
    %v1229 = vsel %vm277, %v1220, 0
    %v1232 = vsel %vm277, %v1221, 0
    %1234 = vmatpush.msra.mxu0 0.0
    %1235 = vmatpush.msra.mxu0 0.0
    %1236 = vmatpush.msra.mxu0 0.0
    %1237 = vmatpush.msra.mxu0 0.0
    %1238 = vmatpush.msra.mxu0 0.0
    %1239 = vmatpush.msra.mxu0 0.0
    %1240 = vmatpush.msra.mxu0 0.0
    %1241 = vmatpush.msra.mxu0 0.0
    %1242 = vmatpush.msra.mxu0 0.0
    %1243 = vmatpush.msra.mxu0 0.0
    %1244 = vmatpush.msra.mxu0 0.0
    %1245 = vmatpush.msra.mxu0 0.0
    %1246 = vmatpush.msra.mxu0 0.0
    %1247 = vmatpush.msra.mxu0 0.0
    %1248 = vmatpush.msra.mxu0 %v1225
    %1249 = vmatpush.msra.mxu0 %v1223
    %1250 = vmatmul.f32.gmra.mxu0 %v1229
    %v1251 = vpop.f32.mrf.mxu0
    %v1252 = vadd.f32 0.0, %v1251
    %1253 = vmatmul.f32.gmra.mxu0 %v1232
    %v1254 = vpop.f32.mrf.mxu0
    %v1255 = vadd.f32 0.0, %v1254
    %1256 = vdwg.mxu0
    %1257 = vrot.lane.b32.xlu0 %v1054, 112
    %v1258 = vpop.permute.xlu0 %1257
    %1259 = vrot.lane.b32.xlu0 %v1057, 112
    %v1260 = vpop.permute.xlu0 %1259
    %1261 = vrot.lane.b32.xlu0 %v1054, 80
    %v1262 = vpop.permute.xlu0 %1261
    %1263 = vrot.lane.b32.xlu0 %v1057, 80
    %v1264 = vpop.permute.xlu0 %1263
    %v1265 = vsel %vm241, %v1258, 0
    %v1267 = vsel %vm241, %v1260, 0
    %v1269 = vsel %vm241, %v1262, 0
    %v1271 = vsel %vm241, %v1264, 0
    %1273 = vmatpush.xpose.msra.mxu0 0.0
    %1274 = vmatpush.xpose.msra.mxu0 0.0
    %1275 = vmatpush.xpose.msra.mxu0 0.0
    %1276 = vmatpush.xpose.msra.mxu0 0.0
    %1277 = vmatpush.xpose.msra.mxu0 0.0
    %1278 = vmatpush.xpose.msra.mxu0 0.0
    %1279 = vmatpush.xpose.msra.mxu0 0.0
    %1280 = vmatpush.xpose.msra.mxu0 0.0
    %1281 = vmatpush.xpose.msra.mxu0 0.0
    %1282 = vmatpush.xpose.msra.mxu0 0.0
    %1283 = vmatpush.xpose.msra.mxu0 0.0
    %1284 = vmatpush.xpose.msra.mxu0 0.0
    %1285 = vmatpush.xpose.msra.mxu0 0.0
    %1286 = vmatpush.xpose.msra.mxu0 0.0
    %1287 = vmatpush.xpose.msra.mxu0 %v1271
    %1288 = vmatpush.xpose.msra.mxu0 %v1269
    %1289 = vmatmul.f32.gmra.mxu0 %v1265
    %v1290 = vpop.f32.mrf.mxu0
    %v1291 = vadd.f32 0.0, %v1290
    %1292 = vmatmul.f32.gmra.mxu0 %v1267
    %v1293 = vpop.f32.mrf.mxu0
    %v1294 = vadd.f32 0.0, %v1293
    %1295 = vdwg.mxu0
    %v1296 = vmul.f32 %v1291, 0.35355338
    %v1297 = vmul.f32 %v1294, 0.35355338
    %v1298 = vadd.f32 %v1296, %v196
    %v1299 = vadd.f32 %v1297, %v197
    %v1300 = vsel %vm277, %v1298, -inf
    %1301 = vmax.xlane.f32.xlu0 %v1300
    %v1302 = vpop.xlane.xlu0 %1301
    %v1303 = vsel %vm277, %v1299, -inf
    %1304 = vmax.xlane.f32.xlu0 %v1303
    %v1305 = vpop.xlane.xlu0 %1304
    %v1306 = vsub.f32 %v1298, %v1302
    %v1307 = vsub.f32 %v1299, %v1305
    %v1308 = vmul.f32 %v1306, 1.442695
    %v1309 = vpow.pop %v1308
    %v1310 = vmul.f32 %v1307, 1.442695
    %v1311 = vpow.pop %v1310
    %v1312 = vsel %vm277, %v1309, 0.0
    %1313 = vadd.xlane.f32.xlu0 %v1312
    %v1314 = vpop.xlane.xlu0 %1313
    %v1315 = vsel %vm277, %v1311, 0.0
    %1316 = vadd.xlane.f32.xlu0 %v1315
    %v1317 = vpop.xlane.xlu0 %1316
    %v1318 = vrcp.pop %v1314
    %v1319 = vrcp.pop %v1317
    %v1320 = vmul.f32 %v1309, %v1318
    %v1321 = vmul.f32 %v1311, %v1319
    %1322 = vrot.lane.b32.xlu0 %v1054, 48
    %v1323 = vpop.permute.xlu0 %1322
    %1324 = vrot.lane.b32.xlu0 %v1057, 48
    %v1325 = vpop.permute.xlu0 %1324
    %v1329 = vsel %vm277, %v1320, 0
    %v1332 = vsel %vm277, %v1321, 0
    %1334 = vmatpush.msra.mxu0 0.0
    %1335 = vmatpush.msra.mxu0 0.0
    %1336 = vmatpush.msra.mxu0 0.0
    %1337 = vmatpush.msra.mxu0 0.0
    %1338 = vmatpush.msra.mxu0 0.0
    %1339 = vmatpush.msra.mxu0 0.0
    %1340 = vmatpush.msra.mxu0 0.0
    %1341 = vmatpush.msra.mxu0 0.0
    %1342 = vmatpush.msra.mxu0 0.0
    %1343 = vmatpush.msra.mxu0 0.0
    %1344 = vmatpush.msra.mxu0 0.0
    %1345 = vmatpush.msra.mxu0 0.0
    %1346 = vmatpush.msra.mxu0 0.0
    %1347 = vmatpush.msra.mxu0 0.0
    %1348 = vmatpush.msra.mxu0 %v1325
    %1349 = vmatpush.msra.mxu0 %v1323
    %1350 = vmatmul.f32.gmra.mxu0 %v1329
    %v1351 = vpop.f32.mrf.mxu0
    %v1352 = vadd.f32 0.0, %v1351
    %1353 = vmatmul.f32.gmra.mxu0 %v1332
    %v1354 = vpop.f32.mrf.mxu0
    %v1355 = vadd.f32 0.0, %v1354
    %1356 = vdwg.mxu0
    %1357 = vrot.lane.b32.xlu0 %v1054, 104
    %v1358 = vpop.permute.xlu0 %1357
    %1359 = vrot.lane.b32.xlu0 %v1057, 104
    %v1360 = vpop.permute.xlu0 %1359
    %1361 = vrot.lane.b32.xlu0 %v1054, 72
    %v1362 = vpop.permute.xlu0 %1361
    %1363 = vrot.lane.b32.xlu0 %v1057, 72
    %v1364 = vpop.permute.xlu0 %1363
    %v1365 = vsel %vm241, %v1358, 0
    %v1367 = vsel %vm241, %v1360, 0
    %v1369 = vsel %vm241, %v1362, 0
    %v1371 = vsel %vm241, %v1364, 0
    %1373 = vmatpush.xpose.msra.mxu0 0.0
    %1374 = vmatpush.xpose.msra.mxu0 0.0
    %1375 = vmatpush.xpose.msra.mxu0 0.0
    %1376 = vmatpush.xpose.msra.mxu0 0.0
    %1377 = vmatpush.xpose.msra.mxu0 0.0
    %1378 = vmatpush.xpose.msra.mxu0 0.0
    %1379 = vmatpush.xpose.msra.mxu0 0.0
    %1380 = vmatpush.xpose.msra.mxu0 0.0
    %1381 = vmatpush.xpose.msra.mxu0 0.0
    %1382 = vmatpush.xpose.msra.mxu0 0.0
    %1383 = vmatpush.xpose.msra.mxu0 0.0
    %1384 = vmatpush.xpose.msra.mxu0 0.0
    %1385 = vmatpush.xpose.msra.mxu0 0.0
    %1386 = vmatpush.xpose.msra.mxu0 0.0
    %1387 = vmatpush.xpose.msra.mxu0 %v1371
    %1388 = vmatpush.xpose.msra.mxu0 %v1369
    %1389 = vmatmul.f32.gmra.mxu0 %v1365
    %v1390 = vpop.f32.mrf.mxu0
    %v1391 = vadd.f32 0.0, %v1390
    %1392 = vmatmul.f32.gmra.mxu0 %v1367
    %v1393 = vpop.f32.mrf.mxu0
    %v1394 = vadd.f32 0.0, %v1393
    %1395 = vdwg.mxu0
    %v1396 = vmul.f32 %v1391, 0.35355338
    %v1397 = vmul.f32 %v1394, 0.35355338
    %v1398 = vadd.f32 %v1396, %v196
    %v1399 = vadd.f32 %v1397, %v197
    %v1400 = vsel %vm277, %v1398, -inf
    %1401 = vmax.xlane.f32.xlu0 %v1400
    %v1402 = vpop.xlane.xlu0 %1401
    %v1403 = vsel %vm277, %v1399, -inf
    %1404 = vmax.xlane.f32.xlu0 %v1403
    %v1405 = vpop.xlane.xlu0 %1404
    %v1406 = vsub.f32 %v1398, %v1402
    %v1407 = vsub.f32 %v1399, %v1405
    %v1408 = vmul.f32 %v1406, 1.442695
    %v1409 = vpow.pop %v1408
    %v1410 = vmul.f32 %v1407, 1.442695
    %v1411 = vpow.pop %v1410
    %v1412 = vsel %vm277, %v1409, 0.0
    %1413 = vadd.xlane.f32.xlu0 %v1412
    %v1414 = vpop.xlane.xlu0 %1413
    %v1415 = vsel %vm277, %v1411, 0.0
    %1416 = vadd.xlane.f32.xlu0 %v1415
    %v1417 = vpop.xlane.xlu0 %1416
    %v1418 = vrcp.pop %v1414
    %v1419 = vrcp.pop %v1417
    %v1420 = vmul.f32 %v1409, %v1418
    %v1421 = vmul.f32 %v1411, %v1419
    %1422 = vrot.lane.b32.xlu0 %v1054, 40
    %v1423 = vpop.permute.xlu0 %1422
    %1424 = vrot.lane.b32.xlu0 %v1057, 40
    %v1425 = vpop.permute.xlu0 %1424
    %v1429 = vsel %vm277, %v1420, 0
    %v1432 = vsel %vm277, %v1421, 0
    %1434 = vmatpush.msra.mxu0 0.0
    %1435 = vmatpush.msra.mxu0 0.0
    %1436 = vmatpush.msra.mxu0 0.0
    %1437 = vmatpush.msra.mxu0 0.0
    %1438 = vmatpush.msra.mxu0 0.0
    %1439 = vmatpush.msra.mxu0 0.0
    %1440 = vmatpush.msra.mxu0 0.0
    %1441 = vmatpush.msra.mxu0 0.0
    %1442 = vmatpush.msra.mxu0 0.0
    %1443 = vmatpush.msra.mxu0 0.0
    %1444 = vmatpush.msra.mxu0 0.0
    %1445 = vmatpush.msra.mxu0 0.0
    %1446 = vmatpush.msra.mxu0 0.0
    %1447 = vmatpush.msra.mxu0 0.0
    %1448 = vmatpush.msra.mxu0 %v1425
    %1449 = vmatpush.msra.mxu0 %v1423
    %1450 = vmatmul.f32.gmra.mxu0 %v1429
    %v1451 = vpop.f32.mrf.mxu0
    %v1452 = vadd.f32 0.0, %v1451
    %1453 = vmatmul.f32.gmra.mxu0 %v1432
    %v1454 = vpop.f32.mrf.mxu0
    %v1455 = vadd.f32 0.0, %v1454
    %1456 = vdwg.mxu0
    %1457 = vrot.lane.b32.xlu0 %v1220, 16
    %v1458 = vpop.permute.xlu0 %1457
    %1459 = vrot.lane.b32.xlu0 %v1221, 16
    %v1460 = vpop.permute.xlu0 %1459
    %1463 = vrot.lane.b32.xlu0 %v1320, 32
    %v1464 = vpop.permute.xlu0 %1463
    %1465 = vrot.lane.b32.xlu0 %v1321, 32
    %v1466 = vpop.permute.xlu0 %1465
    %1469 = vrot.lane.b32.xlu0 %v1420, 48
    %v1470 = vpop.permute.xlu0 %1469
    %1471 = vrot.lane.b32.xlu0 %v1421, 48
    %v1472 = vpop.permute.xlu0 %1471
    %v1475 = vsel %vm277, %v1120, %v1458
    %v1476 = vsel %vm277, %v1121, %v1460
    %v1477 = vsel %vm114, %v1475, %v1464
    %v1478 = vsel %vm114, %v1476, %v1466
    %v1479 = vsel %vm657, %v1477, %v1470
    %v1480 = vsel %vm657, %v1478, %v1472
    %s1481 = scalar_lea.vmem %s23, 16
    %1482 = vst.msk [vmem:[%s1481] sm:$0xff] %vm660, %v1479
    %1483 = vst.msk [vmem:[%s1481 + $0x8] sm:$0xff] %vm660, %v1480
    %1486 = vrot.lane.b32.xlu0 %v1252, 8
    %v1487 = vpop.permute.xlu0 %1486
    %1488 = vrot.lane.b32.xlu0 %v1255, 8
    %v1489 = vpop.permute.xlu0 %1488
    %1494 = vrot.lane.b32.xlu0 %v1352, 16
    %v1495 = vpop.permute.xlu0 %1494
    %1496 = vrot.lane.b32.xlu0 %v1355, 16
    %v1497 = vpop.permute.xlu0 %1496
    %1502 = vrot.lane.b32.xlu0 %v1452, 24
    %v1503 = vpop.permute.xlu0 %1502
    %1504 = vrot.lane.b32.xlu0 %v1455, 24
    %v1505 = vpop.permute.xlu0 %1504
    %v1508 = vsel %vm241, %v1152, %v1487
    %v1509 = vsel %vm241, %v1155, %v1489
    %v1510 = vsel %vm277, %v1508, %v1495
    %v1511 = vsel %vm277, %v1509, %v1497
    %v1512 = vsel %vm691, %v1510, %v1503
    %v1513 = vsel %vm691, %v1511, %v1505
    %s1514 = scalar_lea.vmem %s11, 32
    %v1515 = vld [vmem:[%s1514] sm:$0xff]
    %v1516 = vld [vmem:[%s1514 + $0x8] sm:$0xff]
    %v1517 = vld [vmem:[%s1514 + $0x10] sm:$0xff]
    %v1518 = vld [vmem:[%s1514 + $0x18] sm:$0xff]
    %s1519 = scalar_lea.vmem %s12, 1
    %v1520 = vld [vmem:[%s1519] sm:$0x1]
    %v1522 = vperm.slane %v1520, 0
    %v1525 = vsel %vm114, %v1512, 0
    %v1528 = vsel %vm114, %v1513, 0
    %1530 = vmatpush.msra.mxu0 0.0
    %1531 = vmatpush.msra.mxu0 0.0
    %1532 = vmatpush.msra.mxu0 0.0
    %1533 = vmatpush.msra.mxu0 0.0
    %1534 = vmatpush.msra.mxu0 0.0
    %1535 = vmatpush.msra.mxu0 0.0
    %1536 = vmatpush.msra.mxu0 0.0
    %1537 = vmatpush.msra.mxu0 0.0
    %1538 = vmatpush.msra.mxu0 0.0
    %1539 = vmatpush.msra.mxu0 0.0
    %1540 = vmatpush.msra.mxu0 0.0
    %1541 = vmatpush.msra.mxu0 0.0
    %1542 = vmatpush.msra.mxu0 %v1518
    %1543 = vmatpush.msra.mxu0 %v1517
    %1544 = vmatpush.msra.mxu0 %v1516
    %1545 = vmatpush.msra.mxu0 %v1515
    %1546 = vmatmul.f32.gmra.mxu0 %v1525
    %v1547 = vpop.f32.mrf.mxu0
    %v1548 = vadd.f32 %v1522, %v1547
    %1549 = vmatmul.f32.gmra.mxu0 %v1528
    %v1550 = vpop.f32.mrf.mxu0
    %v1551 = vadd.f32 %v1522, %v1550
    %1552 = vdwg.mxu0
    %v1553 = vadd.f32 %v1018, %v1548
    %v1554 = vadd.f32 %v1019, %v1551
    %s1555 = scalar_lea.vmem %s13, 1
    %v1556 = vld [vmem:[%s1555] sm:$0x1]
    %s1557 = scalar_lea.vmem %s14, 1
    %v1558 = vld [vmem:[%s1557] sm:$0x1]
    %v1559 = vsel %vm114, %v1553, 0.0
    %1560 = vadd.xlane.f32.xlu0 %v1559
    %v1561 = vpop.xlane.xlu0 %1560
    %v1562 = vsel %vm114, %v1554, 0.0
    %1563 = vadd.xlane.f32.xlu0 %v1562
    %v1564 = vpop.xlane.xlu0 %1563
    %v1565 = vmul.f32 %v1561, %v127
    %v1566 = vmul.f32 %v1564, %v127
    %v1567 = vsub.f32 %v1553, %v1565
    %v1568 = vsub.f32 %v1554, %v1566
    %v1569 = vmul.f32 %v1567, %v1567
    %v1570 = vmul.f32 %v1568, %v1568
    %v1571 = vsel %vm114, %v1569, 0.0
    %1572 = vadd.xlane.f32.xlu0 %v1571
    %v1573 = vpop.xlane.xlu0 %1572
    %v1574 = vsel %vm114, %v1570, 0.0
    %1575 = vadd.xlane.f32.xlu0 %v1574
    %v1576 = vpop.xlane.xlu0 %1575
    %v1577 = vmul.f32 %v1573, %v127
    %v1578 = vmul.f32 %v1576, %v127
    %v1579 = vadd.f32 %v1577, 1e-12
    %v1580 = vadd.f32 %v1578, 1e-12
    %v1581 = vrsqrt.pop %v1579
    %v1582 = vmul.f32 %v1581, %v1579
    %v1583 = vmul.f32 %v1582, %v1581
    %v1584 = vmul.f32 0.5, %v1583
    %v1585 = vsub.f32 1.5, %v1584
    %v1586 = vmul.f32 %v1581, %v1585
    %vm1587 = vweird.f32 %v1579
    %vm1588 = vweird.f32 %v1581
    %vm1589 = vmor %vm1587, %vm1588
    %v1590 = vsel %vm1589, %v1581, %v1586
    %v1591 = vrsqrt.pop %v1580
    %v1592 = vmul.f32 %v1591, %v1580
    %v1593 = vmul.f32 %v1592, %v1591
    %v1594 = vmul.f32 0.5, %v1593
    %v1595 = vsub.f32 1.5, %v1594
    %v1596 = vmul.f32 %v1591, %v1595
    %vm1597 = vweird.f32 %v1580
    %vm1598 = vweird.f32 %v1591
    %vm1599 = vmor %vm1597, %vm1598
    %v1600 = vsel %vm1599, %v1591, %v1596
    %v1601 = vmul.f32 %v1567, %v1590
    %v1602 = vmul.f32 %v1568, %v1600
    %v1604 = vperm.slane %v1556, 0
    %v1606 = vmul.f32 %v1604, %v1601
    %v1607 = vmul.f32 %v1604, %v1602
    %v1609 = vperm.slane %v1558, 0
    %v1611 = vadd.f32 %v1606, %v1609
    %v1612 = vadd.f32 %v1607, %v1609
    %s1613 = scalar_lea.vmem %s15, 32
    %v1614 = vld [vmem:[%s1613] sm:$0xff]
    %v1615 = vld [vmem:[%s1613 + $0x8] sm:$0xff]
    %v1616 = vld [vmem:[%s1613 + $0x10] sm:$0xff]
    %v1617 = vld [vmem:[%s1613 + $0x18] sm:$0xff]
    %s1618 = scalar_lea.vmem %s16, 1
    %v1619 = vld [vmem:[%s1618] sm:$0x1]
    %v1621 = vperm.slane %v1619, 0
    %v1624 = vsel %vm114, %v1611, 0
    %v1627 = vsel %vm114, %v1612, 0
    %1629 = vmatpush.msra.mxu0 0.0
    %1630 = vmatpush.msra.mxu0 0.0
    %1631 = vmatpush.msra.mxu0 0.0
    %1632 = vmatpush.msra.mxu0 0.0
    %1633 = vmatpush.msra.mxu0 0.0
    %1634 = vmatpush.msra.mxu0 0.0
    %1635 = vmatpush.msra.mxu0 0.0
    %1636 = vmatpush.msra.mxu0 0.0
    %1637 = vmatpush.msra.mxu0 0.0
    %1638 = vmatpush.msra.mxu0 0.0
    %1639 = vmatpush.msra.mxu0 0.0
    %1640 = vmatpush.msra.mxu0 0.0
    %1641 = vmatpush.msra.mxu0 %v1617
    %1642 = vmatpush.msra.mxu0 %v1616
    %1643 = vmatpush.msra.mxu0 %v1615
    %1644 = vmatpush.msra.mxu0 %v1614
    %1645 = vmatmul.f32.gmra.mxu0 %v1624
    %v1646 = vpop.f32.mrf.mxu0
    %v1647 = vadd.f32 %v1621, %v1646
    %1648 = vmatmul.f32.gmra.mxu0 %v1627
    %v1649 = vpop.f32.mrf.mxu0
    %v1650 = vadd.f32 %v1621, %v1649
    %1651 = vdwg.mxu0
    %v1652 = vmul.f32 %v1647, 0.5
    %v1653 = vmul.f32 %v1650, 0.5
    %v1654 = vmul.f32 %v1647, %v834
    %v1655 = vmul.f32 %v1650, %v834
    %v1656 = vmul.f32 %v1654, %v1654
    %v1657 = vmin.f32 16.0, %v1656
    %v1658 = vmul.f32 %v1657, 2.1237322e-06
    %v1659 = vadd.f32 %v1658, 0.00028619796
    %v1660 = vmul.f32 %v1657, %v1659
    %v1661 = vadd.f32 %v1660, 0.0036580483
    %v1662 = vmul.f32 %v1657, %v1661
    %v1663 = vadd.f32 %v1662, 0.05243302
    %v1664 = vmul.f32 %v1657, %v1663
    %v1665 = vadd.f32 %v1664, 0.18741608
    %v1666 = vmul.f32 %v1657, %v1665
    %v1667 = vadd.f32 %v1666, 1.1283791
    %v1668 = vmul.f32 %v1654, %v1667
    %v1669 = vmul.f32 %v1657, 3.8918573e-05
    %v1670 = vadd.f32 %v1669, 0.001143296
    %v1671 = vmul.f32 %v1657, %v1670
    %v1672 = vadd.f32 %v1671, 0.014752088
    %v1673 = vmul.f32 %v1657, %v1672
    %v1674 = vadd.f32 %v1673, 0.112945676
    %v1675 = vmul.f32 %v1657, %v1674
    %v1676 = vadd.f32 %v1675, 0.4994258
    %v1677 = vmul.f32 %v1657, %v1676
    %v1678 = vadd.f32 %v1677, 1.0
    %v1679 = vrcp.pop %v1678
    %v1680 = vmul.f32 %v1678, %v1679
    %v1681 = vsub.f32 1.0, %v1680
    %v1682 = vmul.f32 %v1679, %v1681
    %v1683 = vadd.f32 %v1679, %v1682
    %vm1684 = vweird.f32 %v1678
    %vm1685 = vweird.f32 %v1679
    %vm1686 = vmor %vm1684, %vm1685
    %v1687 = vsel %vm1686, %v1679, %v1683
    %v1688 = vand.u32 2147483647, %v1678
    %vm1689 = vcmp.eq.f32.partialorder %v1688, 8.507059e+37
    %v1690 = vand.u32 %v1678, 2147483648
    %v1691 = vor.u32 1.1754944e-38, %v1690
    %v1692 = vsel %vm1689, %v1691, %v1687
    %v1693 = vmul.f32 %v1668, %v1692
    %v1694 = vmin.f32 %v1693, 1.0
    %v1695 = vmax.f32 %v1694, -1.0
    %v1696 = vmul.f32 %v1655, %v1655
    %v1697 = vmin.f32 16.0, %v1696
    %v1698 = vmul.f32 %v1697, 2.1237322e-06
    %v1699 = vadd.f32 %v1698, 0.00028619796
    %v1700 = vmul.f32 %v1697, %v1699
    %v1701 = vadd.f32 %v1700, 0.0036580483
    %v1702 = vmul.f32 %v1697, %v1701
    %v1703 = vadd.f32 %v1702, 0.05243302
    %v1704 = vmul.f32 %v1697, %v1703
    %v1705 = vadd.f32 %v1704, 0.18741608
    %v1706 = vmul.f32 %v1697, %v1705
    %v1707 = vadd.f32 %v1706, 1.1283791
    %v1708 = vmul.f32 %v1655, %v1707
    %v1709 = vmul.f32 %v1697, 3.8918573e-05
    %v1710 = vadd.f32 %v1709, 0.001143296
    %v1711 = vmul.f32 %v1697, %v1710
    %v1712 = vadd.f32 %v1711, 0.014752088
    %v1713 = vmul.f32 %v1697, %v1712
    %v1714 = vadd.f32 %v1713, 0.112945676
    %v1715 = vmul.f32 %v1697, %v1714
    %v1716 = vadd.f32 %v1715, 0.4994258
    %v1717 = vmul.f32 %v1697, %v1716
    %v1718 = vadd.f32 %v1717, 1.0
    %v1719 = vrcp.pop %v1718
    %v1720 = vmul.f32 %v1718, %v1719
    %v1721 = vsub.f32 1.0, %v1720
    %v1722 = vmul.f32 %v1719, %v1721
    %v1723 = vadd.f32 %v1719, %v1722
    %vm1724 = vweird.f32 %v1718
    %vm1725 = vweird.f32 %v1719
    %vm1726 = vmor %vm1724, %vm1725
    %v1727 = vsel %vm1726, %v1719, %v1723
    %v1728 = vand.u32 2147483647, %v1718
    %vm1729 = vcmp.eq.f32.partialorder %v1728, 8.507059e+37
    %v1730 = vand.u32 %v1718, 2147483648
    %v1731 = vor.u32 1.1754944e-38, %v1730
    %v1732 = vsel %vm1729, %v1731, %v1727
    %v1733 = vmul.f32 %v1708, %v1732
    %v1734 = vmin.f32 %v1733, 1.0
    %v1735 = vmax.f32 %v1734, -1.0
    %v1736 = vadd.f32 %v1695, 1.0
    %v1737 = vadd.f32 %v1735, 1.0
    %v1738 = vmul.f32 %v1652, %v1736
    %v1739 = vmul.f32 %v1653, %v1737
    %s1740 = scalar_lea.vmem %s17, 64
    %v1741 = vld [vmem:[%s1740] sm:$0xff]
    %v1742 = vld [vmem:[%s1740 + $0x8] sm:$0xff]
    %v1743 = vld [vmem:[%s1740 + $0x10] sm:$0xff]
    %v1744 = vld [vmem:[%s1740 + $0x18] sm:$0xff]
    %v1745 = vld [vmem:[%s1740 + $0x20] sm:$0xff]
    %v1746 = vld [vmem:[%s1740 + $0x28] sm:$0xff]
    %v1747 = vld [vmem:[%s1740 + $0x30] sm:$0xff]
    %v1748 = vld [vmem:[%s1740 + $0x38] sm:$0xff]
    %s1749 = scalar_lea.vmem %s18, 1
    %v1750 = vld [vmem:[%s1749] sm:$0x1]
    %v1752 = vperm.slane %v1750, 0
    %v1755 = vsel %vm660, %v1738, 0
    %v1758 = vsel %vm660, %v1739, 0
    %1760 = vmatpush.msra.mxu0 0.0
    %1761 = vmatpush.msra.mxu0 0.0
    %1762 = vmatpush.msra.mxu0 0.0
    %1763 = vmatpush.msra.mxu0 0.0
    %1764 = vmatpush.msra.mxu0 0.0
    %1765 = vmatpush.msra.mxu0 0.0
    %1766 = vmatpush.msra.mxu0 0.0
    %1767 = vmatpush.msra.mxu0 0.0
    %1768 = vmatpush.msra.mxu0 %v1748
    %1769 = vmatpush.msra.mxu0 %v1747
    %1770 = vmatpush.msra.mxu0 %v1746
    %1771 = vmatpush.msra.mxu0 %v1745
    %1772 = vmatpush.msra.mxu0 %v1744
    %1773 = vmatpush.msra.mxu0 %v1743
    %1774 = vmatpush.msra.mxu0 %v1742
    %1775 = vmatpush.msra.mxu0 %v1741
    %1776 = vmatmul.f32.gmra.mxu0 %v1755
    %v1777 = vpop.f32.mrf.mxu0
    %v1778 = vadd.f32 %v1752, %v1777
    %1779 = vmatmul.f32.gmra.mxu0 %v1758
    %v1780 = vpop.f32.mrf.mxu0
    %v1781 = vadd.f32 %v1752, %v1780
    %1782 = vdwg.mxu0
    %v1783 = vadd.f32 %v1611, %v1778
    %v1784 = vadd.f32 %v1612, %v1781
    %s1785 = scalar_lea.vmem %s19, 1
    %v1786 = vld [vmem:[%s1785] sm:$0x1]
    %s1787 = scalar_lea.vmem %s20, 1
    %v1788 = vld [vmem:[%s1787] sm:$0x1]
    %v1789 = vsel %vm114, %v1783, 0.0
    %1790 = vadd.xlane.f32.xlu0 %v1789
    %v1791 = vpop.xlane.xlu0 %1790
    %v1792 = vsel %vm114, %v1784, 0.0
    %1793 = vadd.xlane.f32.xlu0 %v1792
    %v1794 = vpop.xlane.xlu0 %1793
    %v1795 = vmul.f32 %v1791, %v127
    %v1796 = vmul.f32 %v1794, %v127
    %v1797 = vsub.f32 %v1783, %v1795
    %v1798 = vsub.f32 %v1784, %v1796
    %v1799 = vmul.f32 %v1797, %v1797
    %v1800 = vmul.f32 %v1798, %v1798
    %v1801 = vsel %vm114, %v1799, 0.0
    %1802 = vadd.xlane.f32.xlu0 %v1801
    %v1803 = vpop.xlane.xlu0 %1802
    %v1804 = vsel %vm114, %v1800, 0.0
    %1805 = vadd.xlane.f32.xlu0 %v1804
    %v1806 = vpop.xlane.xlu0 %1805
    %v1807 = vmul.f32 %v1803, %v127
    %v1808 = vmul.f32 %v1806, %v127
    %v1809 = vadd.f32 %v1807, 1e-12
    %v1810 = vadd.f32 %v1808, 1e-12
    %v1811 = vrsqrt.pop %v1809
    %v1812 = vmul.f32 %v1811, %v1809
    %v1813 = vmul.f32 %v1812, %v1811
    %v1814 = vmul.f32 0.5, %v1813
    %v1815 = vsub.f32 1.5, %v1814
    %v1816 = vmul.f32 %v1811, %v1815
    %vm1817 = vweird.f32 %v1809
    %vm1818 = vweird.f32 %v1811
    %vm1819 = vmor %vm1817, %vm1818
    %v1820 = vsel %vm1819, %v1811, %v1816
    %v1821 = vrsqrt.pop %v1810
    %v1822 = vmul.f32 %v1821, %v1810
    %v1823 = vmul.f32 %v1822, %v1821
    %v1824 = vmul.f32 0.5, %v1823
    %v1825 = vsub.f32 1.5, %v1824
    %v1826 = vmul.f32 %v1821, %v1825
    %vm1827 = vweird.f32 %v1810
    %vm1828 = vweird.f32 %v1821
    %vm1829 = vmor %vm1827, %vm1828
    %v1830 = vsel %vm1829, %v1821, %v1826
    %v1831 = vmul.f32 %v1797, %v1820
    %v1832 = vmul.f32 %v1798, %v1830
    %v1834 = vperm.slane %v1786, 0
    %v1836 = vmul.f32 %v1834, %v1831
    %v1837 = vmul.f32 %v1834, %v1832
    %v1839 = vperm.slane %v1788, 0
    %v1841 = vadd.f32 %v1836, %v1839
    %v1842 = vadd.f32 %v1837, %v1839
    %1843 = vst.msk [vmem:[#allocation2] sm:$0xff] %vm114, %v1841
    %1844 = vst.msk [vmem:[#allocation2 + $0x8] sm:$0xff] %vm114, %v1842
    // Predicated region
    $region86: #{transformer_forward.1} parent=1 // pred_check
      _
    $region87: #{transformer_forward.1} parent=1 // pred_check_branch
      %1846 = sbr.rel (0) target = $region89
    $region88: #{transformer_forward.1} parent=1 // pred_region
      %1848 = vsyncadd [#allocation3], 0
      %s1849 = sshll.u32 [#allocation2], 4
      %s1850 = int_to_ptr.vmem [resolvable:$true] %s1849
      %s1851 = sshll.u32 %s21, 4
      %s1852 = int_to_ptr.hbm [resolvable:$true] %s1851
      %1857 = dma.vmem_to_hbm [thread:$0]  %s1850, 256, %s1852, [#allocation3], 128, 128, 8
    $region89: #{transformer_forward.1} parent=1 // pred_fallthru
      _
    // Predicated region
    $region90: #{transformer_forward.1} parent=1 // pred_check
      _
    $region91: #{transformer_forward.1} parent=1 // pred_check_branch
      %1859 = sbr.rel (0) target = $region93
    $region92: #{transformer_forward.1} parent=1 // pred_region
      %1861 = vsyncadd [#allocation5], 0
      %s1862 = sshll.u32 [#allocation4], 4
      %s1863 = int_to_ptr.vmem [resolvable:$true] %s1862
      %s1864 = sshll.u32 %s22, 4
      %s1865 = int_to_ptr.hbm [resolvable:$true] %s1864
      %1870 = dma.vmem_to_hbm [thread:$0]  %s1863, 256, %s1865, [#allocation5], 128, 128, 8
    $region93: #{transformer_forward.1} parent=1 // pred_fallthru
      _
    // Predicated region
    $region94: #{transformer_forward.1} parent=1 // pred_check
      _
    $region95: #{transformer_forward.1} parent=1 // pred_check_branch
      %1872 = sbr.rel (0) target = $region97
    $region96: #{transformer_forward.1} parent=1 // pred_region
      _
    $region97: #{transformer_forward.1} parent=1 // pred_fallthru
      _
    // Predicated region
    $region98: #{transformer_forward.1} parent=1 // pred_check
      _
    $region99: #{transformer_forward.1} parent=1 // pred_check_branch
      %1874 = sbr.rel (0) target = $region101
    $region100: #{transformer_forward.1} parent=1 // pred_region
      %1876 = dma.done [#allocation3], 256
    $region101: #{transformer_forward.1} parent=1 // pred_fallthru
      _
    // Predicated region
    $region102: #{transformer_forward.1} parent=1 // pred_check
      _
    $region103: #{transformer_forward.1} parent=1 // pred_check_branch
      %1878 = sbr.rel (0) target = $region105
    $region104: #{transformer_forward.1} parent=1 // pred_region
      %1880 = dma.done [#allocation5], 256
    $region105: #{transformer_forward.1} parent=1 // pred_fallthru
      _
    // Predicated region
    $region106: #{transformer_forward.1} parent=1 // pred_check
      _
    $region107: #{transformer_forward.1} parent=1 // pred_check_branch
      %1882 = sbr.rel (0) target = $region109
    $region108: #{transformer_forward.1} parent=1 // pred_region
      _
    $region109: #{transformer_forward.1} parent=1 // pred_fallthru
      _
    %1883 = vsyncpa [#allocation3], 1
    %1884 = vsyncpa [#allocation5], 1

</llo_original>
